<compile_context>
chip_gen: v7x
topology: tpu7x:2x2x1
jax: 0.10.0
libtpu: 0.0.40
codegen_flags: <defaults>
</compile_context>

<pallas_src>
import math
from functools import partial

import jax
import jax.numpy as jnp
from jax.experimental import pallas as pl
from jax.experimental.pallas import tpu as pltpu


def _round_up(x, m):
    return ((x + m - 1) // m) * m


# ----------------------------- Pallas kernel -------------------------------

def _win_attn_kernel(xw_ref, q_ref, bias_ref, sel_ref, w3_ref, b3_ref,
                     wout_ref, bout_ref, o_ref, xc_ref, *, num_heads,
                     mxu_dtype):
    """One grid step = BW windows: assemble [window | latent] tokens in VMEM,
    QKV proj -> per-head masked softmax attention (heads folded into the
    matmul row axis via a per-head channel selector on Q) -> fused out_proj.
    All matmuls use bf16 operands with f32 accumulation; softmax is f32."""
    BW, Npad, C = xw_ref.shape
    Nqpad = q_ref.shape[1]
    H = num_heads
    L = Npad + Nqpad

    # ---- assemble [window tokens | latent tokens] in VMEM -------------------
    # The latent tile is identical for every grid step (window-major q
    # replication with BW % B == 0), so it is passed once at block size and
    # stitched here — no nWtot x replication of q in HBM.
    xc_ref[:, :Npad, :] = xw_ref[...]
    xc_ref[:, Npad:, :] = q_ref[...]
    xc = xc_ref[...]                                            # (BW, L, C) bf16

    # ---- Q/K/V projections (softmax scale folded into Q weights/bias) -------
    x2 = xc.reshape(BW * L, C)                                  # layout-preserving
    qp = jnp.dot(x2, w3_ref[0], preferred_element_type=jnp.float32) + b3_ref[0]
    kp = jnp.dot(x2, w3_ref[1], preferred_element_type=jnp.float32) + b3_ref[1]
    vp = jnp.dot(x2, w3_ref[2], preferred_element_type=jnp.float32) + b3_ref[2]
    q3 = qp.reshape(BW, L, C)
    k3 = kp.reshape(BW, L, C)
    v3 = vp.reshape(BW, L, C)

    # ---- fold heads into the matmul row axis ---------------------------------
    # sel[h, c] = 1 iff channel c belongs to head h.  Masking Q per head makes
    # the full-C contraction equal the per-head head_dim contraction, so one
    # batched einsum replaces the per-head loop.  K / V are NOT replicated.
    sel = sel_ref[...]                                          # (H, C) f32
    q_sel = (q3[:, None, :, :] * sel[None, :, None, :]).reshape(BW, H * L, C)

    s = jnp.einsum('bqc,bkc->bqk',
                   q_sel.astype(mxu_dtype), k3.astype(mxu_dtype),
                   preferred_element_type=jnp.float32)          # (BW, H*L, L)

    # additive key-mask bias (0 / -1e30, f32), shared across heads; f32 softmax.
    s4 = s.reshape(BW, H, L, L) + bias_ref[...][:, :, None, :]
    m = jnp.max(s4, axis=-1, keepdims=True)
    e = jnp.exp(s4 - m)
    denom = jnp.maximum(jnp.sum(e, axis=-1, keepdims=True), 1e-30)
    p = (e * pl.reciprocal(denom, approx=True)).reshape(BW, H * L, L)

    oh = jnp.einsum('bqk,bkc->bqc',
                    p.astype(mxu_dtype), v3.astype(mxu_dtype),
                    preferred_element_type=jnp.float32)         # (BW, H*L, C)
    # per-head outputs live in disjoint channel groups, so selector-multiply
    # + sum over heads IS the concatenation over heads.
    o = (oh.reshape(BW, H, L, C) * sel[None, :, None, :]).sum(axis=1)

    # ---- fused out_proj ------------------------------------------------------
    y = (jnp.dot(o.reshape(BW * L, C).astype(mxu_dtype), wout_ref[...],
                 preferred_element_type=jnp.float32) + bout_ref[...])
    o_ref[...] = y.reshape(BW, L, C).astype(o_ref.dtype)


# ----------------------------- pallas_call wrapper --------------------------

def _vmem_capacity_bytes():
    try:
        return int(pltpu.get_tpu_info().vmem_capacity_bytes)
    except Exception:
        return 64 * 1024 * 1024          # safe for every generation (v7x per-TC)


def _per_window_vmem_bytes(Npad, Nqpad, C, H):
    """Rough per-window VMEM footprint (block buffers + in-kernel temps)."""
    L = Npad + Nqpad
    blockspec = 2 * Npad * C * 2 + 2 * L * C * 2     # double-buffered bf16 in/out
    proj = L * C * (2 + 3 * 4 + 2 * 2)               # xc bf16, q/k/v f32, k/v bf16
    headq = H * L * C * (4 + 2)                      # q_sel f32 + bf16 cast
    scores = H * L * L * (3 * 4 + 2)                 # s/e/p f32 + p bf16
    outp = H * L * C * 4 + 2 * L * C * 4             # oh f32, o / y f32
    return blockspec + proj + headq + scores + outp


def _windowed_attention_pallas(xw, q_tile, bias_tile, sel, w3, b3, wout_t,
                               bout, *, num_heads, vmem_limit_bytes,
                               mxu_dtype):
    Bp, Npad, C = xw.shape
    BW, Nqpad, _ = q_tile.shape
    assert Bp % BW == 0 and Npad % 8 == 0 and Nqpad % 8 == 0
    Lk = Npad + Nqpad
    grid = (Bp // BW,)

    flops = (2 * Bp * Lk * C * (3 * C + C)                 # qkv + out_proj
             + 2 * 2 * Bp * num_heads * Lk * Lk * C)       # scores + PV (full-C fold)
    bytes_accessed = 2 * Bp * (Npad + Lk) * C + 4 * 4 * C * C
    cost = pl.CostEstimate(flops=int(flops),
                           transcendentals=int(Bp * num_heads * Lk * Lk),
                           bytes_accessed=int(bytes_accessed))

    kernel = partial(_win_attn_kernel, num_heads=num_heads, mxu_dtype=mxu_dtype)
    return pl.pallas_call(
        kernel,
        out_shape=jax.ShapeDtypeStruct((Bp, Lk, C), mxu_dtype),
        grid_spec=pltpu.PrefetchScalarGridSpec(
            num_scalar_prefetch=0,
            grid=grid,
            in_specs=[
                pl.BlockSpec((BW, Npad, C), lambda i: (i, 0, 0)),     # window tokens (bf16)
                pl.BlockSpec((BW, Nqpad, C), lambda i: (0, 0, 0)),    # latent-query tile (bf16)
                pl.BlockSpec((BW, 1, Lk), lambda i: (0, 0, 0)),       # additive key bias (f32)
                pl.BlockSpec((num_heads, C), lambda i: (0, 0)),       # head channel selector
                pl.BlockSpec((3, C, C), lambda i: (0, 0, 0)),         # Q/K/V weights (Q pre-scaled)
                pl.BlockSpec((3, 1, C), lambda i: (0, 0, 0)),         # Q/K/V biases (f32)
                pl.BlockSpec((C, C), lambda i: (0, 0)),               # out_proj weight
                pl.BlockSpec((1, C), lambda i: (0, 0)),               # out_proj bias (f32)
            ],
            out_specs=pl.BlockSpec((BW, Lk, C), lambda i: (i, 0, 0)),
            scratch_shapes=[pltpu.VMEM((BW, Lk, C), mxu_dtype)],      # assembled tokens
        ),
        compiler_params=pltpu.CompilerParams(
            dimension_semantics=("parallel",),        # megacore / v7x dual-TC sharding
            vmem_limit_bytes=int(vmem_limit_bytes),
        ),
        cost_estimate=cost,
    )(xw, q_tile, bias_tile, sel, w3, b3, wout_t, bout)


# ----------------------------- forward wrapper ------------------------------

def windowed_attention_forward(x, q, q_mask, H, W, params, *, num_heads,
                               window_size, use_mask=True,
                               target_grid_steps=4, mxu_dtype=jnp.bfloat16):
    """Reproduces WindowedAttention.forward (attn_drop = proj_drop = 0.0)."""
    B, N, C = x.shape
    Bq, Nq, Cq = q.shape
    assert B == Bq and Cq == C and N == H * W and C % num_heads == 0
    ws = window_size
    N_ = ws * ws
    H_ = math.ceil(H / ws) * ws
    W_ = math.ceil(W / ws) * ws
    nH, nW = H_ // ws, W_ // ws
    nWtot = nH * nW
    B_ = B * nWtot
    head_dim = C // num_heads
    scale = head_dim ** (-0.5)

    # MXU operands are bf16 anyway -> cast activations once up front so the
    # window-partition glue and the kernel DMAs move half the bytes.
    xb = x.astype(mxu_dtype)
    qb = q.astype(mxu_dtype)

    # pad + window_partition (batch-major flat index b*nWtot + w, as in torch)
    xi = jnp.pad(xb.reshape(B, H, W, C),
                 ((0, 0), (0, H_ - H), (0, W_ - W), (0, 0)))
    xw = xi.reshape(B, nH, ws, nW, ws, C).transpose(0, 1, 3, 2, 4, 5)
    xw = xw.reshape(B_, N_, C)

    # pad token axes to multiples of 16 (bf16 sublane tile); pad keys get -1e30.
    Npad = _round_up(N_, 16)
    Nqpad = _round_up(Nq, 16)
    Lk = Npad + Nqpad
    if Npad != N_:
        xw = jnp.pad(xw, ((0, 0), (0, Npad - N_), (0, 0)))
    q_pad = jnp.pad(qb, ((0, 0), (0, Nqpad - Nq), (0, 0)))

    # per-batch additive key bias: window keys unmasked, window-pad / latent-pad
    # keys masked, real latent keys masked by q_mask (exactly as torch, which
    # pairs window flat index i with q[i % B] / q_mask[i % B], window-major).
    if use_mask:
        lat_bias = jnp.where(q_mask == 0, jnp.float32(-1e30), jnp.float32(0.0))
    else:
        lat_bias = jnp.zeros((B, Nq), jnp.float32)
    bias = jnp.concatenate([
        jnp.zeros((B, N_), jnp.float32),
        jnp.full((B, Npad - N_), -1e30, jnp.float32),
        lat_bias,
        jnp.full((B, Nqpad - Nq), -1e30, jnp.float32),
    ], axis=1).reshape(B, 1, Lk)

    # ---- per-generation block sizing ----------------------------------------
    # windows per grid step = rep * B (rep whole copies of the batch in
    # window-major order), so the per-step latent/bias tile is just q / bias
    # tiled `rep` times — never replicated nWtot x in HBM.
    phys_vmem = _vmem_capacity_bytes()
    vmem_limit = min(phys_vmem * 3 // 4, 100 * 1024 * 1024)
    budget = vmem_limit // 2
    per_win = _per_window_vmem_bytes(Npad, Nqpad, C, num_heads)
    rep_vmem = max(1, budget // (per_win * B))
    rep_steps = max(1, nWtot // max(1, target_grid_steps))  # keep >= target steps
    rep = int(max(1, min(rep_vmem, rep_steps, nWtot)))
    BW = rep * B
    Bp = _round_up(B_, BW)
    if Bp != B_:
        xw = jnp.pad(xw, ((0, Bp - B_), (0, 0), (0, 0)))

    q_tile = jnp.tile(q_pad, (rep, 1, 1))        # (BW, Nqpad, C) bf16 (tiny)
    bias_tile = jnp.tile(bias, (rep, 1, 1))      # (BW, 1, Lk)    f32  (tiny)

    # split fused qkv weights into Q/K/V blocks (no 3C lane slicing in-kernel),
    # fold the softmax scale into Q, cast MXU operands to bf16 (f32 accumulate
    # stays inside the kernel; biases stay f32).
    wqkv_t = params["wqkv_t"].astype(jnp.float32)                    # (C, 3C)
    bqkv = params["bqkv"].reshape(3 * C).astype(jnp.float32)
    w3 = jnp.stack([wqkv_t[:, :C] * scale,
                    wqkv_t[:, C:2 * C],
                    wqkv_t[:, 2 * C:]], axis=0).astype(mxu_dtype)    # (3, C, C)
    b3 = jnp.stack([bqkv[:C] * scale, bqkv[C:2 * C], bqkv[2 * C:]],
                   axis=0).reshape(3, 1, C)                          # (3, 1, C)
    wout_t = params["wout_t"].astype(mxu_dtype)                      # (C, C)
    bout = params["bout"].reshape(1, C).astype(jnp.float32)
    sel = jnp.repeat(jnp.eye(num_heads, dtype=jnp.float32),
                     head_dim, axis=1)                               # (H, C)

    out = _windowed_attention_pallas(
        xw, q_tile, bias_tile, sel, w3, b3, wout_t, bout,
        num_heads=num_heads, vmem_limit_bytes=vmem_limit,
        mxu_dtype=mxu_dtype)                                         # (Bp, Lk, C) bf16
    out = out[:B_]                                                   # drop pad windows

    # window_reverse + crop (out_proj already fused inside the kernel)
    i = out[:, :N_, :].reshape(B, nH, nW, ws, ws, C).transpose(0, 1, 3, 2, 4, 5)
    x_out = i.reshape(B, H_, W_, C)[:, :H, :W, :].reshape(B, N, C)
    x_out = x_out.astype(jnp.float32)

    # batch_mean of latent tokens (window-major grouping, exactly as torch);
    # out_proj is affine so it commutes with the mean.
    q_out = out[:, Npad:Npad + Nq, :].astype(jnp.float32)
    q_out = q_out.reshape(nWtot, B, Nq, C).mean(axis=0)
    return x_out, q_out


# ----------------------------- pure-JAX reference ---------------------------

def _reference_forward(x, q, q_mask, H, W, params, *, num_heads, window_size,
                       use_mask=True):
    B, N, C = x.shape
    Bq, Nq, _ = q.shape
    ws = window_size
    N_ = ws * ws
    H_ = math.ceil(H / ws) * ws
    W_ = math.ceil(W / ws) * ws
    nH, nW = H_ // ws, W_ // ws
    hd = C // num_heads
    scale = hd ** (-0.5)

    xi = jnp.pad(x.reshape(B, H, W, C), ((0, 0), (0, H_ - H), (0, W_ - W), (0, 0)))
    xw = xi.reshape(B, nH, ws, nW, ws, C).transpose(0, 1, 3, 2, 4, 5).reshape(-1, N_, C)
    B_ = xw.shape[0]
    nWtot = B_ // B
    q_exp = jnp.broadcast_to(q[None], (nWtot, B, Nq, C)).reshape(B_, Nq, C)
    xc = jnp.concatenate([xw, q_exp], axis=1)
    L = N_ + Nq

    qkv = xc @ params["wqkv_t"] + params["bqkv"].reshape(1, 1, 3 * C)
    qkv = qkv.reshape(B_, L, 3, num_heads, hd).transpose(2, 0, 3, 1, 4)
    qh, kh, vh = qkv[0], qkv[1], qkv[2]
    attn = jnp.einsum('bhld,bhmd->bhlm', qh, kh) * scale
    if use_mask:
        maskf = jnp.concatenate([jnp.ones((B, N_), q_mask.dtype), q_mask], axis=1)
        maskf = jnp.broadcast_to(maskf[None], (nWtot, B, L)).reshape(B_, 1, 1, L)
        attn = jnp.where(maskf == 0, -jnp.inf, attn)
    attn = jax.nn.softmax(attn, axis=-1)
    out = jnp.einsum('bhlm,bhmd->bhld', attn, vh).transpose(0, 2, 1, 3).reshape(B_, L, C)

    i = out[:, :N_, :].reshape(B, nH, nW, ws, ws, C).transpose(0, 1, 3, 2, 4, 5)
    xr = i.reshape(B, H_, W_, C)[:, :H, :W, :].reshape(B, N, C)
    t = out[:, N_:, :].reshape(nWtot, B, Nq, C).mean(axis=0)
    x_out = xr @ params["wout_t"] + params["bout"].reshape(1, 1, C)
    q_out = t @ params["wout_t"] + params["bout"].reshape(1, 1, C)
    return x_out, q_out


# ----------------------------- main ------------------------------------------

if __name__ == "__main__":
    dim = 32
    num_heads = 4
    window_size = 4
    B, H, W = 2, 6, 6
    N = H * W
    Nq = 8

    key = jax.random.PRNGKey(0)
    kx, kq, km, k1, k2, k3, k4 = jax.random.split(key, 7)

    x = jax.random.normal(kx, (B, N, dim), dtype=jnp.float32)
    q = jax.random.normal(kq, (B, Nq, dim), dtype=jnp.float32)
    q_mask = (jax.random.uniform(km, (B, Nq)) > 0.3).astype(jnp.float32)

    # in_proj: Linear(dim, 3*dim, bias=True); out_proj: Linear(dim, dim).
    # Weights stored pre-transposed as (C_in, C_out).
    params = {
        "wqkv_t": 0.1 * jax.random.normal(k1, (dim, 3 * dim), dtype=jnp.float32),
        "bqkv": 0.05 * jax.random.normal(k2, (1, 3 * dim), dtype=jnp.float32),
        "wout_t": 0.1 * jax.random.normal(k3, (dim, dim), dtype=jnp.float32),
        "bout": 0.05 * jax.random.normal(k4, (1, dim), dtype=jnp.float32),
    }

    # NOTE: self.use_mask is never set in the torch __init__; treated here as a
    # compile-time flag (True) so the q_mask path is exercised.
    # TODO(synk): attn_drop / proj_drop are 0.0 (identity) — dropout not implemented.
    fwd = jax.jit(partial(windowed_attention_forward, num_heads=num_heads,
                          window_size=window_size, use_mask=True),
                  static_argnums=(3, 4))
    x_out, q_out = fwd(x, q, q_mask, H, W, params)
    jax.block_until_ready((x_out, q_out))

    assert x_out.shape == (B, N, dim) and q_out.shape == (B, Nq, dim)

    # correctness vs. pure-JAX reference (loose tolerance: bf16 MXU operands,
    # bf16 kernel output, approximate reciprocal in the softmax).
    x_ref, q_ref = _reference_forward(x, q, q_mask, H, W, params,
                                      num_heads=num_heads,
                                      window_size=window_size, use_mask=True)
    assert jnp.allclose(x_out, x_ref, atol=5e-2, rtol=5e-2), \
        float(jnp.max(jnp.abs(x_out - x_ref)))
    assert jnp.allclose(q_out, q_ref, atol=5e-2, rtol=5e-2), \
        float(jnp.max(jnp.abs(q_out - q_ref)))

    print("KERNEL_OK")
</pallas_src>

<mosaic_0001>
module attributes {stable_mosaic.version = 11 : i64} {
  func.func @_win_attn_kernel(%arg0: i32, %arg1: memref<2x16x32xbf16, #tpu.memory_space<vmem>>, %arg2: memref<2x16x32xbf16, #tpu.memory_space<vmem>>, %arg3: memref<2x1x32xf32, #tpu.memory_space<vmem>>, %arg4: memref<4x32xf32, #tpu.memory_space<vmem>>, %arg5: memref<3x32x32xbf16, #tpu.memory_space<vmem>>, %arg6: memref<3x1x32xf32, #tpu.memory_space<vmem>>, %arg7: memref<32x32xbf16, #tpu.memory_space<vmem>>, %arg8: memref<1x32xf32, #tpu.memory_space<vmem>>, %arg9: memref<2x32x32xbf16, #tpu.memory_space<vmem>>, %arg10: memref<2x32x32xbf16, #tpu.memory_space<vmem>>) attributes {dimension_semantics = [#tpu.dimension_semantics<parallel>], iteration_bounds = array<i64: 4>, scalar_prefetch = 0 : i64, scratch_operands = 1 : i64, tpu.core_type = #tpu.core_type<tc>, window_params = [{transform_indices = @transform_0, window_bounds = array<i64: 2, 16, 32>}, {pipeline_mode = #tpu.pipeline_mode<synchronous>, transform_indices = @transform_1, window_bounds = array<i64: 2, 16, 32>}, {pipeline_mode = #tpu.pipeline_mode<synchronous>, transform_indices = @transform_2, window_bounds = array<i64: 2, 1, 32>}, {pipeline_mode = #tpu.pipeline_mode<synchronous>, transform_indices = @transform_3, window_bounds = array<i64: 4, 32>}, {pipeline_mode = #tpu.pipeline_mode<synchronous>, transform_indices = @transform_4, window_bounds = array<i64: 3, 32, 32>}, {pipeline_mode = #tpu.pipeline_mode<synchronous>, transform_indices = @transform_5, window_bounds = array<i64: 3, 1, 32>}, {pipeline_mode = #tpu.pipeline_mode<synchronous>, transform_indices = @transform_6, window_bounds = array<i64: 32, 32>}, {pipeline_mode = #tpu.pipeline_mode<synchronous>, transform_indices = @transform_7, window_bounds = array<i64: 1, 32>}, {transform_indices = @transform_8, window_bounds = array<i64: 2, 32, 32>}]} {
    %c0 = arith.constant 0 : index
    %c0_0 = arith.constant 0 : index
    %c0_1 = arith.constant 0 : index
    %0 = vector.load %arg1[%c0, %c0_0, %c0_1] : memref<2x16x32xbf16, #tpu.memory_space<vmem>>, vector<2x16x32xbf16>
    %c0_2 = arith.constant 0 : index
    %c0_3 = arith.constant 0 : index
    %c0_4 = arith.constant 0 : index
    %1 = vector.load %arg10[%c0_2, %c0_3, %c0_4] : memref<2x32x32xbf16, #tpu.memory_space<vmem>>, vector<2x16x32xbf16>
    tpu.vector_store %arg10[%c0_2, %c0_3, %c0_4], %0 {strides = array<i32>} : memref<2x32x32xbf16, #tpu.memory_space<vmem>>, vector<2x16x32xbf16>,
    %c0_5 = arith.constant 0 : index
    %c0_6 = arith.constant 0 : index
    %c0_7 = arith.constant 0 : index
    %2 = vector.load %arg2[%c0_5, %c0_6, %c0_7] : memref<2x16x32xbf16, #tpu.memory_space<vmem>>, vector<2x16x32xbf16>
    %c0_8 = arith.constant 0 : index
    %c16 = arith.constant 16 : index
    %c0_9 = arith.constant 0 : index
    %3 = vector.load %arg10[%c0_8, %c16, %c0_9] : memref<2x32x32xbf16, #tpu.memory_space<vmem>>, vector<2x16x32xbf16>
    tpu.vector_store %arg10[%c0_8, %c16, %c0_9], %2 {strides = array<i32>} : memref<2x32x32xbf16, #tpu.memory_space<vmem>>, vector<2x16x32xbf16>,
    %c0_10 = arith.constant 0 : index
    %c0_11 = arith.constant 0 : index
    %c0_12 = arith.constant 0 : index
    %4 = vector.load %arg10[%c0_10, %c0_11, %c0_12] : memref<2x32x32xbf16, #tpu.memory_space<vmem>>, vector<2x32x32xbf16>
    %5 = vector.shape_cast %4 : vector<2x32x32xbf16> to vector<64x32xbf16>
    %c0_13 = arith.constant 0 : index
    %c0_14 = arith.constant 0 : index
    %c0_15 = arith.constant 0 : index
    %6 = vector.load %arg5[%c0_13, %c0_14, %c0_15] : memref<3x32x32xbf16, #tpu.memory_space<vmem>>, vector<1x32x32xbf16>
    %7 = vector.shape_cast %6 : vector<1x32x32xbf16> to vector<32x32xbf16>
    %cst = arith.constant dense<0.000000e+00> : vector<64x32xf32>
    %8 = tpu.matmul %5, %7, %cst {dimension_numbers = #tpu.dot_dimension_numbers<[1], [0], [0], [1], [0, 0, 1, 1], [], []>} : vector<64x32xbf16>, vector<32x32xbf16>, vector<64x32xf32> -> vector<64x32xf32>
    %c0_16 = arith.constant 0 : index
    %c0_17 = arith.constant 0 : index
    %c0_18 = arith.constant 0 : index
    %9 = vector.load %arg6[%c0_16, %c0_17, %c0_18] : memref<3x1x32xf32, #tpu.memory_space<vmem>>, vector<1x1x32xf32>
    %10 = vector.shape_cast %9 : vector<1x1x32xf32> to vector<1x32xf32>
    %11 = vector.broadcast %10 : vector<1x32xf32> to vector<64x32xf32>
    %12 = arith.addf %8, %11 : vector<64x32xf32>
    %c1 = arith.constant 1 : index
    %c0_19 = arith.constant 0 : index
    %c0_20 = arith.constant 0 : index
    %13 = vector.load %arg5[%c1, %c0_19, %c0_20] : memref<3x32x32xbf16, #tpu.memory_space<vmem>>, vector<1x32x32xbf16>
    %14 = vector.shape_cast %13 : vector<1x32x32xbf16> to vector<32x32xbf16>
    %cst_21 = arith.constant dense<0.000000e+00> : vector<64x32xf32>
    %15 = tpu.matmul %5, %14, %cst_21 {dimension_numbers = #tpu.dot_dimension_numbers<[1], [0], [0], [1], [0, 0, 1, 1], [], []>} : vector<64x32xbf16>, vector<32x32xbf16>, vector<64x32xf32> -> vector<64x32xf32>
    %c1_22 = arith.constant 1 : index
    %c0_23 = arith.constant 0 : index
    %c0_24 = arith.constant 0 : index
    %16 = vector.load %arg6[%c1_22, %c0_23, %c0_24] : memref<3x1x32xf32, #tpu.memory_space<vmem>>, vector<1x1x32xf32>
    %17 = vector.shape_cast %16 : vector<1x1x32xf32> to vector<1x32xf32>
    %18 = vector.broadcast %17 : vector<1x32xf32> to vector<64x32xf32>
    %19 = arith.addf %15, %18 : vector<64x32xf32>
    %c2 = arith.constant 2 : index
    %c0_25 = arith.constant 0 : index
    %c0_26 = arith.constant 0 : index
    %20 = vector.load %arg5[%c2, %c0_25, %c0_26] : memref<3x32x32xbf16, #tpu.memory_space<vmem>>, vector<1x32x32xbf16>
    %21 = vector.shape_cast %20 : vector<1x32x32xbf16> to vector<32x32xbf16>
    %cst_27 = arith.constant dense<0.000000e+00> : vector<64x32xf32>
    %22 = tpu.matmul %5, %21, %cst_27 {dimension_numbers = #tpu.dot_dimension_numbers<[1], [0], [0], [1], [0, 0, 1, 1], [], []>} : vector<64x32xbf16>, vector<32x32xbf16>, vector<64x32xf32> -> vector<64x32xf32>
    %c2_28 = arith.constant 2 : index
    %c0_29 = arith.constant 0 : index
    %c0_30 = arith.constant 0 : index
    %23 = vector.load %arg6[%c2_28, %c0_29, %c0_30] : memref<3x1x32xf32, #tpu.memory_space<vmem>>, vector<1x1x32xf32>
    %24 = vector.shape_cast %23 : vector<1x1x32xf32> to vector<1x32xf32>
    %25 = vector.broadcast %24 : vector<1x32xf32> to vector<64x32xf32>
    %26 = arith.addf %22, %25 : vector<64x32xf32>
    %27 = vector.shape_cast %12 : vector<64x32xf32> to vector<2x32x32xf32>
    %28 = vector.shape_cast %19 : vector<64x32xf32> to vector<2x32x32xf32>
    %29 = vector.shape_cast %26 : vector<64x32xf32> to vector<2x32x32xf32>
    %c0_31 = arith.constant 0 : index
    %c0_32 = arith.constant 0 : index
    %30 = vector.load %arg4[%c0_31, %c0_32] : memref<4x32xf32, #tpu.memory_space<vmem>>, vector<4x32xf32>
    %31 = vector.shape_cast %27 : vector<2x32x32xf32> to vector<2x1x32x32xf32>
    %32 = vector.shape_cast %30 : vector<4x32xf32> to vector<1x4x1x32xf32>
    %33 = vector.broadcast %31 : vector<2x1x32x32xf32> to vector<2x4x32x32xf32>
    %34 = vector.broadcast %32 : vector<1x4x1x32xf32> to vector<2x4x32x32xf32>
    %35 = arith.mulf %33, %34 : vector<2x4x32x32xf32>
    %36 = vector.shape_cast %35 : vector<2x4x32x32xf32> to vector<2x128x32xf32>
    %37 = arith.truncf %36 : vector<2x128x32xf32> to vector<2x128x32xbf16>
    %38 = arith.truncf %28 : vector<2x32x32xf32> to vector<2x32x32xbf16>
    "tpu.trace_start"() <{level = 10 : i32, message = "bqc,bkc->bqk"}> : () -> ()
    %cst_33 = arith.constant dense<0.000000e+00> : vector<2x128x32xf32>
    %39 = tpu.matmul %37, %38, %cst_33 {dimension_numbers = #tpu.dot_dimension_numbers<[2], [2], [1], [1], [0, 0, 0, 1, 1, 1], [0], [0]>} : vector<2x128x32xbf16>, vector<2x32x32xbf16>, vector<2x128x32xf32> -> vector<2x128x32xf32>
    "tpu.trace_stop"() : () -> ()
    %40 = vector.shape_cast %39 : vector<2x128x32xf32> to vector<2x4x32x32xf32>
    %c0_34 = arith.constant 0 : index
    %c0_35 = arith.constant 0 : index
    %c0_36 = arith.constant 0 : index
    %41 = vector.load %arg3[%c0_34, %c0_35, %c0_36] : memref<2x1x32xf32, #tpu.memory_space<vmem>>, vector<2x1x32xf32>
    %42 = vector.shape_cast %41 : vector<2x1x32xf32> to vector<2x1x1x32xf32>
    %43 = vector.broadcast %42 : vector<2x1x1x32xf32> to vector<2x4x32x32xf32>
    %44 = arith.addf %40, %43 : vector<2x4x32x32xf32>
    %cst_37 = arith.constant dense<0xFF800000> : vector<2x4x32xf32>
    %45 = vector.multi_reduction <maximumf>, %44, %cst_37 [3] : vector<2x4x32x32xf32> to vector<2x4x32xf32>
    %46 = vector.shape_cast %45 : vector<2x4x32xf32> to vector<2x4x32x1xf32>
    %47 = vector.broadcast %46 : vector<2x4x32x1xf32> to vector<2x4x32x32xf32>
    %48 = arith.subf %44, %47 : vector<2x4x32x32xf32>
    %49 = math.exp %48 : vector<2x4x32x32xf32>
    %cst_38 = arith.constant dense<0.000000e+00> : vector<2x4x32xf32>
    %50 = vector.multi_reduction <add>, %49, %cst_38 [3] : vector<2x4x32x32xf32> to vector<2x4x32xf32>
    %51 = vector.shape_cast %50 : vector<2x4x32xf32> to vector<2x4x32x1xf32>
    %cst_39 = arith.constant 1.000000e-30 : f32
    %52 = vector.broadcast %cst_39 : f32 to vector<2x4x32x1xf32>
    %53 = arith.maximumf %51, %52 : vector<2x4x32x1xf32>
    %54 = tpu.reciprocal %53 {approx = true} : vector<2x4x32x1xf32> -> vector<2x4x32x1xf32>
    %55 = vector.broadcast %54 : vector<2x4x32x1xf32> to vector<2x4x32x32xf32>
    %56 = arith.mulf %49, %55 : vector<2x4x32x32xf32>
    %57 = vector.shape_cast %56 : vector<2x4x32x32xf32> to vector<2x128x32xf32>
    %58 = arith.truncf %57 : vector<2x128x32xf32> to vector<2x128x32xbf16>
    %59 = arith.truncf %29 : vector<2x32x32xf32> to vector<2x32x32xbf16>
    "tpu.trace_start"() <{level = 10 : i32, message = "bqk,bkc->bqc"}> : () -> ()
    %cst_40 = arith.constant dense<0.000000e+00> : vector<2x128x32xf32>
    %60 = tpu.matmul %58, %59, %cst_40 {dimension_numbers = #tpu.dot_dimension_numbers<[2], [1], [1], [2], [0, 0, 0, 1, 1, 2], [0], [0]>} : vector<2x128x32xbf16>, vector<2x32x32xbf16>, vector<2x128x32xf32> -> vector<2x128x32xf32>
    "tpu.trace_stop"() : () -> ()
    %61 = vector.shape_cast %60 : vector<2x128x32xf32> to vector<2x4x32x32xf32>
    %62 = vector.shape_cast %30 : vector<4x32xf32> to vector<1x4x1x32xf32>
    %63 = vector.broadcast %62 : vector<1x4x1x32xf32> to vector<2x4x32x32xf32>
    %64 = arith.mulf %61, %63 : vector<2x4x32x32xf32>
    %cst_41 = arith.constant dense<0.000000e+00> : vector<2x32x32xf32>
    %65 = vector.multi_reduction <add>, %64, %cst_41 [1] : vector<2x4x32x32xf32> to vector<2x32x32xf32>
    %66 = vector.shape_cast %65 : vector<2x32x32xf32> to vector<64x32xf32>
    %67 = arith.truncf %66 : vector<64x32xf32> to vector<64x32xbf16>
    %c0_42 = arith.constant 0 : index
    %c0_43 = arith.constant 0 : index
    %68 = vector.load %arg7[%c0_42, %c0_43] : memref<32x32xbf16, #tpu.memory_space<vmem>>, vector<32x32xbf16>
    %cst_44 = arith.constant dense<0.000000e+00> : vector<64x32xf32>
    %69 = tpu.matmul %67, %68, %cst_44 {dimension_numbers = #tpu.dot_dimension_numbers<[1], [0], [0], [1], [0, 0, 1, 1], [], []>} : vector<64x32xbf16>, vector<32x32xbf16>, vector<64x32xf32> -> vector<64x32xf32>
    %c0_45 = arith.constant 0 : index
    %c0_46 = arith.constant 0 : index
    %70 = vector.load %arg8[%c0_45, %c0_46] : memref<1x32xf32, #tpu.memory_space<vmem>>, vector<1x32xf32>
    %71 = vector.broadcast %70 : vector<1x32xf32> to vector<64x32xf32>
    %72 = arith.addf %69, %71 : vector<64x32xf32>
    %73 = vector.shape_cast %72 : vector<64x32xf32> to vector<2x32x32xf32>
    %74 = arith.truncf %73 : vector<2x32x32xf32> to vector<2x32x32xbf16>
    %c0_47 = arith.constant 0 : index
    %c0_48 = arith.constant 0 : index
    %c0_49 = arith.constant 0 : index
    %75 = vector.load %arg9[%c0_47, %c0_48, %c0_49] : memref<2x32x32xbf16, #tpu.memory_space<vmem>>, vector<2x32x32xbf16>
    tpu.vector_store %arg9[%c0_47, %c0_48, %c0_49], %74 {strides = array<i32>} : memref<2x32x32xbf16, #tpu.memory_space<vmem>>, vector<2x32x32xbf16>,
    return
  }
  func.func @transform_0(%arg0: i32) -> (i32, i32, i32) {
    %c0_i32 = arith.constant 0 : i32
    %c0_i32_0 = arith.constant 0 : i32
    %c0_i32_1 = arith.constant 0 : i32
    return %arg0, %c0_i32, %c0_i32_0 : i32, i32, i32
  }
  func.func @transform_1(%arg0: i32) -> (i32, i32, i32) {
    %c0_i32 = arith.constant 0 : i32
    %c0_i32_0 = arith.constant 0 : i32
    %c0_i32_1 = arith.constant 0 : i32
    %c0_i32_2 = arith.constant 0 : i32
    return %c0_i32, %c0_i32_0, %c0_i32_1 : i32, i32, i32
  }
  func.func @transform_2(%arg0: i32) -> (i32, i32, i32) {
    %c0_i32 = arith.constant 0 : i32
    %c0_i32_0 = arith.constant 0 : i32
    %c0_i32_1 = arith.constant 0 : i32
    %c0_i32_2 = arith.constant 0 : i32
    return %c0_i32, %c0_i32_0, %c0_i32_1 : i32, i32, i32
  }
  func.func @transform_3(%arg0: i32) -> (i32, i32) {
    %c0_i32 = arith.constant 0 : i32
    %c0_i32_0 = arith.constant 0 : i32
    %c0_i32_1 = arith.constant 0 : i32
    return %c0_i32, %c0_i32_0 : i32, i32
  }
  func.func @transform_4(%arg0: i32) -> (i32, i32, i32) {
    %c0_i32 = arith.constant 0 : i32
    %c0_i32_0 = arith.constant 0 : i32
    %c0_i32_1 = arith.constant 0 : i32
    %c0_i32_2 = arith.constant 0 : i32
    return %c0_i32, %c0_i32_0, %c0_i32_1 : i32, i32, i32
  }
  func.func @transform_5(%arg0: i32) -> (i32, i32, i32) {
    %c0_i32 = arith.constant 0 : i32
    %c0_i32_0 = arith.constant 0 : i32
    %c0_i32_1 = arith.constant 0 : i32
    %c0_i32_2 = arith.constant 0 : i32
    return %c0_i32, %c0_i32_0, %c0_i32_1 : i32, i32, i32
  }
  func.func @transform_6(%arg0: i32) -> (i32, i32) {
    %c0_i32 = arith.constant 0 : i32
    %c0_i32_0 = arith.constant 0 : i32
    %c0_i32_1 = arith.constant 0 : i32
    return %c0_i32, %c0_i32_0 : i32, i32
  }
  func.func @transform_7(%arg0: i32) -> (i32, i32) {
    %c0_i32 = arith.constant 0 : i32
    %c0_i32_0 = arith.constant 0 : i32
    %c0_i32_1 = arith.constant 0 : i32
    return %c0_i32, %c0_i32_0 : i32, i32
  }
  func.func @transform_8(%arg0: i32) -> (i32, i32, i32) {
    %c0_i32 = arith.constant 0 : i32
    %c0_i32_0 = arith.constant 0 : i32
    %c0_i32_1 = arith.constant 0 : i32
    return %arg0, %c0_i32, %c0_i32_0 : i32, i32, i32
  }
}

</mosaic_0001>

<llo_original>
// kernel: windowed_attention_forward.1
$region0: #{windowed_attention_forward.1}
  #allocation0 [shape = 'u32[]', space=smem, size = 0x4, offset = 0x4, fixed_abs, tag = 'smem constant byte address 0x4 - core index']
  #allocation1 [shape = 'u32[144,128]{1,0:T(1,128)}', space=vmem, size = 0x12000, scoped, tag = 'internal scratch']
  #allocation2 [shape = 'bf16[2,32,32]{2,1,0:T(16,128)(2,1)}', space=vmem, size = 0x4000, scoped, tag = 'scratch operand']
  %s0 = inlined_call_operand.vmem [shape: bf16[8,16,32], index: 0, kind: input, shape index: {}]
  %s1 = inlined_call_operand.vmem [shape: bf16[2,16,32], index: 1, kind: input, shape index: {}]
  %s2 = inlined_call_operand.vmem [shape: f32[2,1,32], index: 2, kind: input, shape index: {}]
  %s3 = inlined_call_operand.vmem [shape: f32[4,32], index: 3, kind: input, shape index: {}]
  %s4 = inlined_call_operand.vmem [shape: bf16[3,32,32], index: 4, kind: input, shape index: {}]
  %s5 = inlined_call_operand.vmem [shape: f32[3,1,32], index: 5, kind: input, shape index: {}]
  %s6 = inlined_call_operand.vmem [shape: bf16[32,32], index: 6, kind: input, shape index: {}]
  %s7 = inlined_call_operand.vmem [shape: f32[1,32], index: 7, kind: input, shape index: {}]
  %s8 = inlined_call_operand.vmem [shape: bf16[8,32,32], index: 8, kind: output, shape index: {}]
  %s9 = sld [smem:[#allocation0]]
  $region65: #{windowed_attention_forward.1} parent=0
    _
  %s11 = ssub.s32 1, %s9
  %s12 = scalar_select 0, %s11, %s9
  loop: start=0, step=1, limit=6
  $region2: #{windowed_attention_forward.1} parent=0 // loop_pre_header
    _
  $region3: #{windowed_attention_forward.1} parent=0 // loop_header
    %s14 = sphi 0, %s18
    %p15 = scmp.ge.s32.totalorder %s14, 6
    %s24 = sphi 0, %s26
    %s27 = sphi 0, %s24
    %s28 = sphi 0, %s27
    %s44 = sphi 0, %s28
    %s48 = sphi 0, %s48
    %s50 = sphi 0, %s48
    %s51 = sphi 0, %s50
    %s65 = sphi 0, %s51
    %s69 = sphi 0, %s69
    %s71 = sphi 0, %s69
    %s72 = sphi 0, %s71
    %s86 = sphi 0, %s72
    %s90 = sphi 0, %s90
    %s92 = sphi 0, %s90
    %s93 = sphi 0, %s92
    %s107 = sphi 0, %s93
    %s111 = sphi 0, %s111
    %s113 = sphi 0, %s111
    %s114 = sphi 0, %s113
    %s128 = sphi 0, %s114
    %s132 = sphi 0, %s132
    %s134 = sphi 0, %s132
    %s135 = sphi 0, %s134
    %s149 = sphi 0, %s135
    %s153 = sphi 0, %s153
    %s155 = sphi 0, %s153
    %s156 = sphi 0, %s155
    %s170 = sphi 0, %s156
    %s174 = sphi 0, %s174
    %s176 = sphi 0, %s174
    %s177 = sphi 0, %s176
    %s191 = sphi 0, %s177
    %s197 = sphi 0, %s199
    %s200 = sphi 0, %s197
    %s201 = sphi 0, %s200
    %s217 = sphi 0, %s201
  $region4: #{windowed_attention_forward.1} parent=0 // loop_header_branch
    %17 = sbr.rel (%p15) target = $region8
  $region5: #{windowed_attention_forward.1} parent=0 // loop_body
    %s19 = ssub.s32 %s14, 1
    %s20 = ssub.s32 %s14, 2
    %s21 = sadd.s32 %s14, 1
    %s22 = ssub.s32 %s14, %s21
    %p23 = scmp.eq.s32.totalorder %s22, 0
    %s25 = sadd.s32 %s24, 1
    %s26 = scalar_select %p23, %s24, %s25
    %p29 = pneg %p23
    %p30 = scmp.eq.s32.totalorder %s14, 3
    %p31 = por %p29, %p30
    %p32 = scmp.ne.s32.totalorder %s24, %s27
    %p33 = scmp.eq.s32.totalorder %s14, 0
    %p34 = por %p32, %p33
    %p35 = scmp.ne.s32.totalorder %s24, %s27
    %p36 = scmp.eq.s32.totalorder %s19, 3
    %p37 = por %p35, %p36
    %p38 = scmp.ne.s32.totalorder %s27, %s28
    %p39 = scmp.eq.s32.totalorder %s19, 0
    %p40 = por %p38, %p39
    %p41 = scmp.ne.s32.totalorder %s27, %s28
    %p42 = scmp.eq.s32.totalorder %s20, 3
    %p43 = por %p41, %p42
    %p45 = scmp.ne.s32.totalorder %s28, %s44
    %p46 = scmp.eq.s32.totalorder %s20, 0
    %p47 = por %p45, %p46
    %s49 = sadd.s32 %s48, 1
    %p52 = scmp.eq.s32.totalorder %s14, 3
    %p53 = scmp.ne.s32.totalorder %s48, %s50
    %p54 = scmp.eq.s32.totalorder %s14, 0
    %p55 = por %p53, %p54
    %p56 = scmp.ne.s32.totalorder %s48, %s50
    %p57 = scmp.eq.s32.totalorder %s19, 3
    %p58 = por %p56, %p57
    %p59 = scmp.ne.s32.totalorder %s50, %s51
    %p60 = scmp.eq.s32.totalorder %s19, 0
    %p61 = por %p59, %p60
    %p62 = scmp.ne.s32.totalorder %s50, %s51
    %p63 = scmp.eq.s32.totalorder %s20, 3
    %p64 = por %p62, %p63
    %p66 = scmp.ne.s32.totalorder %s51, %s65
    %p67 = scmp.eq.s32.totalorder %s20, 0
    %p68 = por %p66, %p67
    %s70 = sadd.s32 %s69, 1
    %p73 = scmp.eq.s32.totalorder %s14, 3
    %p74 = scmp.ne.s32.totalorder %s69, %s71
    %p75 = scmp.eq.s32.totalorder %s14, 0
    %p76 = por %p74, %p75
    %p77 = scmp.ne.s32.totalorder %s69, %s71
    %p78 = scmp.eq.s32.totalorder %s19, 3
    %p79 = por %p77, %p78
    %p80 = scmp.ne.s32.totalorder %s71, %s72
    %p81 = scmp.eq.s32.totalorder %s19, 0
    %p82 = por %p80, %p81
    %p83 = scmp.ne.s32.totalorder %s71, %s72
    %p84 = scmp.eq.s32.totalorder %s20, 3
    %p85 = por %p83, %p84
    %p87 = scmp.ne.s32.totalorder %s72, %s86
    %p88 = scmp.eq.s32.totalorder %s20, 0
    %p89 = por %p87, %p88
    %s91 = sadd.s32 %s90, 1
    %p94 = scmp.eq.s32.totalorder %s14, 3
    %p95 = scmp.ne.s32.totalorder %s90, %s92
    %p96 = scmp.eq.s32.totalorder %s14, 0
    %p97 = por %p95, %p96
    %p98 = scmp.ne.s32.totalorder %s90, %s92
    %p99 = scmp.eq.s32.totalorder %s19, 3
    %p100 = por %p98, %p99
    %p101 = scmp.ne.s32.totalorder %s92, %s93
    %p102 = scmp.eq.s32.totalorder %s19, 0
    %p103 = por %p101, %p102
    %p104 = scmp.ne.s32.totalorder %s92, %s93
    %p105 = scmp.eq.s32.totalorder %s20, 3
    %p106 = por %p104, %p105
    %p108 = scmp.ne.s32.totalorder %s93, %s107
    %p109 = scmp.eq.s32.totalorder %s20, 0
    %p110 = por %p108, %p109
    %s112 = sadd.s32 %s111, 1
    %p115 = scmp.eq.s32.totalorder %s14, 3
    %p116 = scmp.ne.s32.totalorder %s111, %s113
    %p117 = scmp.eq.s32.totalorder %s14, 0
    %p118 = por %p116, %p117
    %p119 = scmp.ne.s32.totalorder %s111, %s113
    %p120 = scmp.eq.s32.totalorder %s19, 3
    %p121 = por %p119, %p120
    %p122 = scmp.ne.s32.totalorder %s113, %s114
    %p123 = scmp.eq.s32.totalorder %s19, 0
    %p124 = por %p122, %p123
    %p125 = scmp.ne.s32.totalorder %s113, %s114
    %p126 = scmp.eq.s32.totalorder %s20, 3
    %p127 = por %p125, %p126
    %p129 = scmp.ne.s32.totalorder %s114, %s128
    %p130 = scmp.eq.s32.totalorder %s20, 0
    %p131 = por %p129, %p130
    %s133 = sadd.s32 %s132, 1
    %p136 = scmp.eq.s32.totalorder %s14, 3
    %p137 = scmp.ne.s32.totalorder %s132, %s134
    %p138 = scmp.eq.s32.totalorder %s14, 0
    %p139 = por %p137, %p138
    %p140 = scmp.ne.s32.totalorder %s132, %s134
    %p141 = scmp.eq.s32.totalorder %s19, 3
    %p142 = por %p140, %p141
    %p143 = scmp.ne.s32.totalorder %s134, %s135
    %p144 = scmp.eq.s32.totalorder %s19, 0
    %p145 = por %p143, %p144
    %p146 = scmp.ne.s32.totalorder %s134, %s135
    %p147 = scmp.eq.s32.totalorder %s20, 3
    %p148 = por %p146, %p147
    %p150 = scmp.ne.s32.totalorder %s135, %s149
    %p151 = scmp.eq.s32.totalorder %s20, 0
    %p152 = por %p150, %p151
    %s154 = sadd.s32 %s153, 1
    %p157 = scmp.eq.s32.totalorder %s14, 3
    %p158 = scmp.ne.s32.totalorder %s153, %s155
    %p159 = scmp.eq.s32.totalorder %s14, 0
    %p160 = por %p158, %p159
    %p161 = scmp.ne.s32.totalorder %s153, %s155
    %p162 = scmp.eq.s32.totalorder %s19, 3
    %p163 = por %p161, %p162
    %p164 = scmp.ne.s32.totalorder %s155, %s156
    %p165 = scmp.eq.s32.totalorder %s19, 0
    %p166 = por %p164, %p165
    %p167 = scmp.ne.s32.totalorder %s155, %s156
    %p168 = scmp.eq.s32.totalorder %s20, 3
    %p169 = por %p167, %p168
    %p171 = scmp.ne.s32.totalorder %s156, %s170
    %p172 = scmp.eq.s32.totalorder %s20, 0
    %p173 = por %p171, %p172
    %s175 = sadd.s32 %s174, 1
    %p178 = scmp.eq.s32.totalorder %s14, 3
    %p179 = scmp.ne.s32.totalorder %s174, %s176
    %p180 = scmp.eq.s32.totalorder %s14, 0
    %p181 = por %p179, %p180
    %p182 = scmp.ne.s32.totalorder %s174, %s176
    %p183 = scmp.eq.s32.totalorder %s19, 3
    %p184 = por %p182, %p183
    %p185 = scmp.ne.s32.totalorder %s176, %s177
    %p186 = scmp.eq.s32.totalorder %s19, 0
    %p187 = por %p185, %p186
    %p188 = scmp.ne.s32.totalorder %s176, %s177
    %p189 = scmp.eq.s32.totalorder %s20, 3
    %p190 = por %p188, %p189
    %p192 = scmp.ne.s32.totalorder %s177, %s191
    %p193 = scmp.eq.s32.totalorder %s20, 0
    %p194 = por %p192, %p193
    %s195 = ssub.s32 %s14, %s21
    %p196 = scmp.eq.s32.totalorder %s195, 0
    %s198 = sadd.s32 %s197, 1
    %s199 = scalar_select %p196, %s197, %s198
    %p202 = pneg %p196
    %p203 = scmp.eq.s32.totalorder %s14, 3
    %p204 = por %p202, %p203
    %p205 = scmp.ne.s32.totalorder %s197, %s200
    %p206 = scmp.eq.s32.totalorder %s14, 0
    %p207 = por %p205, %p206
    %p208 = scmp.ne.s32.totalorder %s197, %s200
    %p209 = scmp.eq.s32.totalorder %s19, 3
    %p210 = por %p208, %p209
    %p211 = scmp.ne.s32.totalorder %s200, %s201
    %p212 = scmp.eq.s32.totalorder %s19, 0
    %p213 = por %p211, %p212
    %p214 = scmp.ne.s32.totalorder %s200, %s201
    %p215 = scmp.eq.s32.totalorder %s20, 3
    %p216 = por %p214, %p215
    %p218 = scmp.ne.s32.totalorder %s201, %s217
    %p219 = scmp.eq.s32.totalorder %s20, 0
    %p220 = por %p218, %p219
    %p221 = scmp.le.s32.totalorder 1, %s14
    %p222 = scmp.lt.s32.totalorder %s14, 5
    %p223 = pnand %p221, %p222
    %p224 = pneg %p223
    // Predicated region
    $region9: #{windowed_attention_forward.1} parent=5 // pred_check
      _
    $region10: #{windowed_attention_forward.1} parent=5 // pred_check_branch
      %226 = sbr.rel (%p223) target = $region12
    $region11: #{windowed_attention_forward.1} parent=5 // pred_region
      %s227 = ssub.s32 %s14, 1
      // Predicated region
      $region13: #{windowed_attention_forward.1} parent=11 // pred_check
        %p228 = pneg %p61
      $region14: #{windowed_attention_forward.1} parent=11 // pred_check_branch
        %230 = sbr.rel (%p228) target = $region16
      $region15: #{windowed_attention_forward.1} parent=11 // pred_region
        _
      $region16: #{windowed_attention_forward.1} parent=11 // pred_fallthru
        _
      // Predicated region
      $region17: #{windowed_attention_forward.1} parent=11 // pred_check
        %p231 = pneg %p82
      $region18: #{windowed_attention_forward.1} parent=11 // pred_check_branch
        %233 = sbr.rel (%p231) target = $region20
      $region19: #{windowed_attention_forward.1} parent=11 // pred_region
        _
      $region20: #{windowed_attention_forward.1} parent=11 // pred_fallthru
        _
      // Predicated region
      $region21: #{windowed_attention_forward.1} parent=11 // pred_check
        %p234 = pneg %p103
      $region22: #{windowed_attention_forward.1} parent=11 // pred_check_branch
        %236 = sbr.rel (%p234) target = $region24
      $region23: #{windowed_attention_forward.1} parent=11 // pred_region
        _
      $region24: #{windowed_attention_forward.1} parent=11 // pred_fallthru
        _
      // Predicated region
      $region25: #{windowed_attention_forward.1} parent=11 // pred_check
        %p237 = pneg %p124
      $region26: #{windowed_attention_forward.1} parent=11 // pred_check_branch
        %239 = sbr.rel (%p237) target = $region28
      $region27: #{windowed_attention_forward.1} parent=11 // pred_region
        _
      $region28: #{windowed_attention_forward.1} parent=11 // pred_fallthru
        _
      // Predicated region
      $region29: #{windowed_attention_forward.1} parent=11 // pred_check
        %p240 = pneg %p145
      $region30: #{windowed_attention_forward.1} parent=11 // pred_check_branch
        %242 = sbr.rel (%p240) target = $region32
      $region31: #{windowed_attention_forward.1} parent=11 // pred_region
        _
      $region32: #{windowed_attention_forward.1} parent=11 // pred_fallthru
        _
      // Predicated region
      $region33: #{windowed_attention_forward.1} parent=11 // pred_check
        %p243 = pneg %p166
      $region34: #{windowed_attention_forward.1} parent=11 // pred_check_branch
        %245 = sbr.rel (%p243) target = $region36
      $region35: #{windowed_attention_forward.1} parent=11 // pred_region
        _
      $region36: #{windowed_attention_forward.1} parent=11 // pred_fallthru
        _
      // Predicated region
      $region37: #{windowed_attention_forward.1} parent=11 // pred_check
        %p246 = pneg %p187
      $region38: #{windowed_attention_forward.1} parent=11 // pred_check_branch
        %248 = sbr.rel (%p246) target = $region40
      $region39: #{windowed_attention_forward.1} parent=11 // pred_region
        _
      $region40: #{windowed_attention_forward.1} parent=11 // pred_fallthru
        _
    $region12: #{windowed_attention_forward.1} parent=5 // pred_fallthru
      _
    %p249 = scmp.lt.s32.totalorder %s14, 4
    // Predicated region
    $region41: #{windowed_attention_forward.1} parent=5 // pred_check
      %p250 = pneg %p249
    $region42: #{windowed_attention_forward.1} parent=5 // pred_check_branch
      %252 = sbr.rel (%p250) target = $region44
    $region43: #{windowed_attention_forward.1} parent=5 // pred_region
      // Predicated region
      $region45: #{windowed_attention_forward.1} parent=43 // pred_check
        %p253 = pneg %p34
      $region46: #{windowed_attention_forward.1} parent=43 // pred_check_branch
        %255 = sbr.rel (%p253) target = $region48
      $region47: #{windowed_attention_forward.1} parent=43 // pred_region
        %s256 = smul.u32 2, %s14
        %p257 = scmp.lt.s32.totalorder %s256, 7
        %s258 = scalar_select %p257, %s256, 7
        %s259 = smul.addr %s258, 2
        %s260 = smul.addr %s259, 4
        %s261 = scalar_lea.vmem %s0, %s260
        %s262 = smul.u32 2, %s14
      $region48: #{windowed_attention_forward.1} parent=43 // pred_fallthru
        _
    $region44: #{windowed_attention_forward.1} parent=5 // pred_fallthru
      _
    %p263 = scmp.le.s32.totalorder 1, %s14
    %p264 = scmp.lt.s32.totalorder %s14, 5
    %p265 = pnand %p263, %p264
    %p266 = pneg %p265
    // Predicated region
    $region49: #{windowed_attention_forward.1} parent=5 // pred_check
      _
    $region50: #{windowed_attention_forward.1} parent=5 // pred_check_branch
      %268 = sbr.rel (%p265) target = $region52
    $region51: #{windowed_attention_forward.1} parent=5 // pred_region
      %s269 = ssub.s32 %s14, 1
      %s270 = smul.u32 2, %s19
      %p271 = scmp.lt.s32.totalorder %s270, 7
      %s272 = scalar_select %p271, %s270, 7
      %s273 = smul.addr %s272, 2
      %s274 = smul.addr %s273, 4
      %s275 = scalar_lea.vmem %s0, %s274
      %p276 = pneg %p40
      %p277 = pneg %p37
      %p278 = pneg %p61
      %p279 = pneg %p58
      %p280 = pneg %p82
      %p281 = pneg %p79
      %p282 = pneg %p103
      %p283 = pneg %p100
      %p284 = pneg %p124
      %p285 = pneg %p121
      %p286 = pneg %p145
      %p287 = pneg %p142
      %p288 = pneg %p166
      %p289 = pneg %p163
      %p290 = pneg %p187
      %p291 = pneg %p184
      %p292 = pneg %p213
      %p293 = pneg %p210
      %s294 = smul.u32 2, %s19
      %p295 = scmp.lt.s32.totalorder %s294, 7
      %s296 = scalar_select %p295, %s294, 7
      %s297 = smul.addr %s296, 4
      %s298 = smul.addr %s297, 4
      %s299 = scalar_lea.vmem %s8, %s298
      %s300 = smul.u32 2, %s19
      %p301 = scmp.lt.s32.totalorder %s300, 7
      %s302 = scalar_select %p301, %s300, 7
      %s303 = smul.addr %s302, 2
      %s304 = smul.addr %s303, 4
      %s305 = scalar_lea.vmem %s0, %s304
      %s306 = smul.u32 2, %s19
      %s307 = smul.u32 2, %s19
      %p308 = scmp.lt.s32.totalorder %s307, 7
      %s309 = scalar_select %p308, %s307, 7
      %s310 = smul.addr %s309, 4
      %s311 = smul.addr %s310, 4
      %s312 = scalar_lea.vmem %s8, %s311
      %s313 = smul.u32 2, %s19
      %v315 = vld [vmem:[%s305] sm:$0xf]
      %v316 = vld [vmem:[%s305 + $0x4] sm:$0xf]
      %v317 = vld [vmem:[%s305 + $0x8] sm:$0xf]
      %v318 = vld [vmem:[%s305 + $0xc] sm:$0xf]
      %v323 = vunpack.c.l.b16 %v315
      %v324 = vunpack.c.l.b16 %v316
      %v325 = vunpack.c.l.b16 %v317
      %v326 = vunpack.c.l.b16 %v318
      %v327 = vpack.c.b16 %v324, %v323
      %v328 = vpack.c.b16 %v326, %v325
      %vm331 = vcmask 261120
      %332 = vst.msk [vmem:[#allocation2] sm:$0xff] %vm331, %v327
      %333 = vst.msk [vmem:[#allocation2 + $0x10] sm:$0xff] %vm331, %v328
      %v334 = vld [vmem:[%s1] sm:$0xf]
      %v335 = vld [vmem:[%s1 + $0x4] sm:$0xf]
      %v336 = vld [vmem:[%s1 + $0x8] sm:$0xf]
      %v337 = vld [vmem:[%s1 + $0xc] sm:$0xf]
      %v342 = vunpack.c.l.b16 %v334
      %v343 = vunpack.c.l.b16 %v335
      %v344 = vunpack.c.l.b16 %v336
      %v345 = vunpack.c.l.b16 %v337
      %v346 = vpack.c.b16 %v343, %v342
      %v347 = vpack.c.b16 %v345, %v344
      %350 = vst.msk [vmem:[#allocation2 + $0x8] sm:$0xff] %vm331, %v346
      %351 = vst.msk [vmem:[#allocation2 + $0x18] sm:$0xff] %vm331, %v347
      %v352 = vld [vmem:[#allocation2] sm:$0xff]
      %v353 = vld [vmem:[#allocation2 + $0x8] sm:$0xff]
      %v354 = vld [vmem:[#allocation2 + $0x10] sm:$0xff]
      %v355 = vld [vmem:[#allocation2 + $0x18] sm:$0xff]
      %v356 = vld [vmem:[%s4] sm:$0xf]
      %v357 = vld [vmem:[%s4 + $0x4] sm:$0xf]
      %v358 = vld [vmem:[%s4 + $0x8] sm:$0xf]
      %v359 = vld [vmem:[%s4 + $0xc] sm:$0xf]
      %v360 = vld [vmem:[%s5] sm:$0x1]
      %v362 = vlaneseq
      %v363 = vshrl.u32 %v362, 7
      %v364 = vsub.s32 0, %v363
      %v365 = vrot.slane %v360, %v364
      %v371 = vunpack.c.l.b16 %v356
      %v372 = vunpack.c.l.b16 %v357
      %v373 = vunpack.c.l.b16 %v358
      %v374 = vunpack.c.l.b16 %v359
      %v375 = vpack.c.b16 %v372, %v371
      %v376 = vpack.c.b16 %v374, %v373
      %v380 = vsel %vm331, %v352, 0
      %v383 = vsel %vm331, %v353, 0
      %v386 = vsel %vm331, %v354, 0
      %v389 = vsel %vm331, %v355, 0
      %391 = vmatprep.subr.bf16.mxu0 0
      %392 = vmatpush1.bf16.msra.mxu0 %v375
      %393 = vmatprep.subr.bf16.mxu0 0
      %394 = vmatpush1.bf16.msra.mxu0 %v376
      %395 = vmatprep.subr.bf16.mxu0 0
      %396 = vmatpush1.bf16.msra.mxu0 0
      %397 = vmatprep.subr.bf16.mxu0 0
      %398 = vmatpush1.bf16.msra.mxu0 0
      %399 = vmatprep.subr.bf16.mxu0 0
      %400 = vmatpush1.bf16.msra.mxu0 0
      %401 = vmatprep.subr.bf16.mxu0 0
      %402 = vmatpush1.bf16.msra.mxu0 0
      %403 = vmatprep.subr.bf16.mxu0 0
      %404 = vmatpush1.bf16.msra.mxu0 0
      %405 = vmatprep.subr.bf16.mxu0 0
      %406 = vmatpush1.bf16.msra.mxu0 0
      %407 = vmatprep.subr.bf16.mxu0 0
      %408 = vmatpush1.bf16.msra.mxu0 0
      %409 = vmatprep.subr.bf16.mxu0 0
      %410 = vmatpush1.bf16.msra.mxu0 0
      %411 = vmatprep.subr.bf16.mxu0 0
      %412 = vmatpush1.bf16.msra.mxu0 0
      %413 = vmatprep.subr.bf16.mxu0 0
      %414 = vmatpush1.bf16.msra.mxu0 0
      %415 = vmatprep.subr.bf16.mxu0 0
      %416 = vmatpush1.bf16.msra.mxu0 0
      %417 = vmatprep.subr.bf16.mxu0 0
      %418 = vmatpush1.bf16.msra.mxu0 0
      %419 = vmatprep.subr.bf16.mxu0 0
      %420 = vmatpush1.bf16.msra.mxu0 0
      %421 = vmatprep.subr.bf16.mxu0 0
      %422 = vmatpush1.bf16.msra.mxu0 0
      %423 = vmatprep.mubr.bf16.mxu0 0
      %424 = vmatmul.mubr.bf16.gmra.mrb[0].mxu0 %v380
      %v425 = vpop.f32.mrb[0].mxu0
      %v426 = vadd.f32 %v365, %v425
      %v427 = vpop.f32.mrb[0].mxu0
      %v428 = vpop.f32.mrb[0].mxu0
      %v429 = vadd.f32 %v365, %v428
      %v430 = vpop.f32.mrb[0].mxu0
      %431 = vmatprep.mubr.bf16.mxu0 0
      %432 = vmatmul.mubr.bf16.gmra.mrb[0].mxu0 %v383
      %v433 = vpop.f32.mrb[0].mxu0
      %v434 = vadd.f32 %v365, %v433
      %v435 = vpop.f32.mrb[0].mxu0
      %v436 = vpop.f32.mrb[0].mxu0
      %v437 = vadd.f32 %v365, %v436
      %v438 = vpop.f32.mrb[0].mxu0
      %439 = vmatprep.mubr.bf16.mxu0 0
      %440 = vmatmul.mubr.bf16.gmra.mrb[0].mxu0 %v386
      %v441 = vpop.f32.mrb[0].mxu0
      %v442 = vadd.f32 %v365, %v441
      %v443 = vpop.f32.mrb[0].mxu0
      %v444 = vpop.f32.mrb[0].mxu0
      %v445 = vadd.f32 %v365, %v444
      %v446 = vpop.f32.mrb[0].mxu0
      %447 = vmatprep.mubr.bf16.mxu0 0
      %448 = vmatmul.mubr.bf16.gmra.mrb[0].mxu0 %v389
      %v449 = vpop.f32.mrb[0].mxu0
      %v450 = vadd.f32 %v365, %v449
      %v451 = vpop.f32.mrb[0].mxu0
      %v452 = vpop.f32.mrb[0].mxu0
      %v453 = vadd.f32 %v365, %v452
      %v454 = vpop.f32.mrb[0].mxu0
      %455 = vdwg.mxu0
      %s456 = scalar_lea.vmem %s4, 16
      %v457 = vld [vmem:[%s456] sm:$0xf]
      %v458 = vld [vmem:[%s456 + $0x4] sm:$0xf]
      %v459 = vld [vmem:[%s456 + $0x8] sm:$0xf]
      %v460 = vld [vmem:[%s456 + $0xc] sm:$0xf]
      %s461 = scalar_lea.vmem %s5, 1
      %v462 = vld [vmem:[%s461] sm:$0x1]
      %v464 = vlaneseq
      %v465 = vshrl.u32 %v464, 7
      %v466 = vsub.s32 0, %v465
      %v467 = vrot.slane %v462, %v466
      %v473 = vunpack.c.l.b16 %v457
      %v474 = vunpack.c.l.b16 %v458
      %v475 = vunpack.c.l.b16 %v459
      %v476 = vunpack.c.l.b16 %v460
      %v477 = vpack.c.b16 %v474, %v473
      %v478 = vpack.c.b16 %v476, %v475
      %481 = vmatprep.subr.bf16.mxu0 0
      %482 = vmatpush1.bf16.msra.mxu0 %v477
      %483 = vmatprep.subr.bf16.mxu0 0
      %484 = vmatpush1.bf16.msra.mxu0 %v478
      %485 = vmatprep.subr.bf16.mxu0 0
      %486 = vmatpush1.bf16.msra.mxu0 0
      %487 = vmatprep.subr.bf16.mxu0 0
      %488 = vmatpush1.bf16.msra.mxu0 0
      %489 = vmatprep.subr.bf16.mxu0 0
      %490 = vmatpush1.bf16.msra.mxu0 0
      %491 = vmatprep.subr.bf16.mxu0 0
      %492 = vmatpush1.bf16.msra.mxu0 0
      %493 = vmatprep.subr.bf16.mxu0 0
      %494 = vmatpush1.bf16.msra.mxu0 0
      %495 = vmatprep.subr.bf16.mxu0 0
      %496 = vmatpush1.bf16.msra.mxu0 0
      %497 = vmatprep.subr.bf16.mxu0 0
      %498 = vmatpush1.bf16.msra.mxu0 0
      %499 = vmatprep.subr.bf16.mxu0 0
      %500 = vmatpush1.bf16.msra.mxu0 0
      %501 = vmatprep.subr.bf16.mxu0 0
      %502 = vmatpush1.bf16.msra.mxu0 0
      %503 = vmatprep.subr.bf16.mxu0 0
      %504 = vmatpush1.bf16.msra.mxu0 0
      %505 = vmatprep.subr.bf16.mxu0 0
      %506 = vmatpush1.bf16.msra.mxu0 0
      %507 = vmatprep.subr.bf16.mxu0 0
      %508 = vmatpush1.bf16.msra.mxu0 0
      %509 = vmatprep.subr.bf16.mxu0 0
      %510 = vmatpush1.bf16.msra.mxu0 0
      %511 = vmatprep.subr.bf16.mxu0 0
      %512 = vmatpush1.bf16.msra.mxu0 0
      %513 = vmatprep.mubr.bf16.mxu0 0
      %514 = vmatmul.mubr.bf16.gmra.mrb[0].mxu0 %v380
      %v515 = vpop.f32.mrb[0].mxu0
      %v516 = vadd.f32 %v467, %v515
      %v517 = vpop.f32.mrb[0].mxu0
      %v518 = vpop.f32.mrb[0].mxu0
      %v519 = vadd.f32 %v467, %v518
      %v520 = vpop.f32.mrb[0].mxu0
      %521 = vmatprep.mubr.bf16.mxu0 0
      %522 = vmatmul.mubr.bf16.gmra.mrb[0].mxu0 %v383
      %v523 = vpop.f32.mrb[0].mxu0
      %v524 = vadd.f32 %v467, %v523
      %v525 = vpop.f32.mrb[0].mxu0
      %v526 = vpop.f32.mrb[0].mxu0
      %v527 = vadd.f32 %v467, %v526
      %v528 = vpop.f32.mrb[0].mxu0
      %529 = vmatprep.mubr.bf16.mxu0 0
      %530 = vmatmul.mubr.bf16.gmra.mrb[0].mxu0 %v386
      %v531 = vpop.f32.mrb[0].mxu0
      %v532 = vadd.f32 %v467, %v531
      %v533 = vpop.f32.mrb[0].mxu0
      %v534 = vpop.f32.mrb[0].mxu0
      %v535 = vadd.f32 %v467, %v534
      %v536 = vpop.f32.mrb[0].mxu0
      %537 = vmatprep.mubr.bf16.mxu0 0
      %538 = vmatmul.mubr.bf16.gmra.mrb[0].mxu0 %v389
      %v539 = vpop.f32.mrb[0].mxu0
      %v540 = vadd.f32 %v467, %v539
      %v541 = vpop.f32.mrb[0].mxu0
      %v542 = vpop.f32.mrb[0].mxu0
      %v543 = vadd.f32 %v467, %v542
      %v544 = vpop.f32.mrb[0].mxu0
      %545 = vdwg.mxu0
      %s546 = scalar_lea.vmem %s4, 32
      %v547 = vld [vmem:[%s546] sm:$0xf]
      %v548 = vld [vmem:[%s546 + $0x4] sm:$0xf]
      %v549 = vld [vmem:[%s546 + $0x8] sm:$0xf]
      %v550 = vld [vmem:[%s546 + $0xc] sm:$0xf]
      %s551 = scalar_lea.vmem %s5, 2
      %v552 = vld [vmem:[%s551] sm:$0x1]
      %v554 = vlaneseq
      %v555 = vshrl.u32 %v554, 7
      %v556 = vsub.s32 0, %v555
      %v557 = vrot.slane %v552, %v556
      %v563 = vunpack.c.l.b16 %v547
      %v564 = vunpack.c.l.b16 %v548
      %v565 = vunpack.c.l.b16 %v549
      %v566 = vunpack.c.l.b16 %v550
      %v567 = vpack.c.b16 %v564, %v563
      %v568 = vpack.c.b16 %v566, %v565
      %571 = vmatprep.subr.bf16.mxu0 0
      %572 = vmatpush1.bf16.msra.mxu0 %v567
      %573 = vmatprep.subr.bf16.mxu0 0
      %574 = vmatpush1.bf16.msra.mxu0 %v568
      %575 = vmatprep.subr.bf16.mxu0 0
      %576 = vmatpush1.bf16.msra.mxu0 0
      %577 = vmatprep.subr.bf16.mxu0 0
      %578 = vmatpush1.bf16.msra.mxu0 0
      %579 = vmatprep.subr.bf16.mxu0 0
      %580 = vmatpush1.bf16.msra.mxu0 0
      %581 = vmatprep.subr.bf16.mxu0 0
      %582 = vmatpush1.bf16.msra.mxu0 0
      %583 = vmatprep.subr.bf16.mxu0 0
      %584 = vmatpush1.bf16.msra.mxu0 0
      %585 = vmatprep.subr.bf16.mxu0 0
      %586 = vmatpush1.bf16.msra.mxu0 0
      %587 = vmatprep.subr.bf16.mxu0 0
      %588 = vmatpush1.bf16.msra.mxu0 0
      %589 = vmatprep.subr.bf16.mxu0 0
      %590 = vmatpush1.bf16.msra.mxu0 0
      %591 = vmatprep.subr.bf16.mxu0 0
      %592 = vmatpush1.bf16.msra.mxu0 0
      %593 = vmatprep.subr.bf16.mxu0 0
      %594 = vmatpush1.bf16.msra.mxu0 0
      %595 = vmatprep.subr.bf16.mxu0 0
      %596 = vmatpush1.bf16.msra.mxu0 0
      %597 = vmatprep.subr.bf16.mxu0 0
      %598 = vmatpush1.bf16.msra.mxu0 0
      %599 = vmatprep.subr.bf16.mxu0 0
      %600 = vmatpush1.bf16.msra.mxu0 0
      %601 = vmatprep.subr.bf16.mxu0 0
      %602 = vmatpush1.bf16.msra.mxu0 0
      %603 = vmatprep.mubr.bf16.mxu0 0
      %604 = vmatmul.mubr.bf16.gmra.mrb[0].mxu0 %v380
      %v605 = vpop.f32.mrb[0].mxu0
      %v606 = vadd.f32 %v557, %v605
      %v607 = vpop.f32.mrb[0].mxu0
      %v608 = vpop.f32.mrb[0].mxu0
      %v609 = vadd.f32 %v557, %v608
      %v610 = vpop.f32.mrb[0].mxu0
      %611 = vmatprep.mubr.bf16.mxu0 0
      %612 = vmatmul.mubr.bf16.gmra.mrb[0].mxu0 %v383
      %v613 = vpop.f32.mrb[0].mxu0
      %v614 = vadd.f32 %v557, %v613
      %v615 = vpop.f32.mrb[0].mxu0
      %v616 = vpop.f32.mrb[0].mxu0
      %v617 = vadd.f32 %v557, %v616
      %v618 = vpop.f32.mrb[0].mxu0
      %619 = vmatprep.mubr.bf16.mxu0 0
      %620 = vmatmul.mubr.bf16.gmra.mrb[0].mxu0 %v386
      %v621 = vpop.f32.mrb[0].mxu0
      %v622 = vadd.f32 %v557, %v621
      %v623 = vpop.f32.mrb[0].mxu0
      %v624 = vpop.f32.mrb[0].mxu0
      %v625 = vadd.f32 %v557, %v624
      %v626 = vpop.f32.mrb[0].mxu0
      %627 = vmatprep.mubr.bf16.mxu0 0
      %628 = vmatmul.mubr.bf16.gmra.mrb[0].mxu0 %v389
      %v629 = vpop.f32.mrb[0].mxu0
      %v630 = vadd.f32 %v557, %v629
      %v631 = vpop.f32.mrb[0].mxu0
      %v632 = vpop.f32.mrb[0].mxu0
      %v633 = vadd.f32 %v557, %v632
      %v634 = vpop.f32.mrb[0].mxu0
      %635 = vdwg.mxu0
      %v636 = vld [vmem:[%s3] sm:$0xf]
      %v639 = vunpack.c.l.s4 1966171168
      %v640 = vunpack.c.0.s8 %v639
      %v641 = vlaneseq
      %v642 = vshrl.u32 %v641, 7
      %v643 = vsub.s32 %v640, %v642
      %v644 = vrot.slane %v636, %v643
      %v645 = vcombine.high %v644, %v644
      %v647 = vunpack.c.l.s4 1966171168
      %v648 = vunpack.c.0.s8 %v647
      %v649 = vlaneseq
      %v650 = vshrl.u32 %v649, 7
      %v651 = vsub.s32 %v648, %v650
      %v652 = vrot.slane %v644, %v651
      %v654 = vunpack.c.l.s4 1966171168
      %v655 = vunpack.c.0.s8 %v654
      %v656 = vlaneseq
      %v657 = vshrl.u32 %v656, 7
      %v658 = vsub.s32 %v655, %v657
      %v659 = vrot.slane %v645, %v658
      %v660 = vcombine.high %v652, %v652
      %v661 = vcombine.high %v659, %v659
      %v662 = vlaneseq
      %v663 = vshrl.u32 %v662, 7
      %v664 = vsub.s32 0, %v663
      %v665 = vrot.slane %v652, %v664
      %v666 = vlaneseq
      %v667 = vshrl.u32 %v666, 7
      %v668 = vsub.s32 0, %v667
      %v669 = vrot.slane %v659, %v668
      %v670 = vlaneseq
      %v671 = vshrl.u32 %v670, 7
      %v672 = vsub.s32 0, %v671
      %v673 = vrot.slane %v660, %v672
      %v674 = vlaneseq
      %v675 = vshrl.u32 %v674, 7
      %v676 = vsub.s32 0, %v675
      %v677 = vrot.slane %v661, %v676
      %v682 = vmul.f32 %v426, %v665
      %v683 = vmul.f32 %v429, %v665
      %v684 = vmul.f32 %v434, %v665
      %v685 = vmul.f32 %v437, %v665
      %v686 = vmul.f32 %v426, %v669
      %v687 = vmul.f32 %v429, %v669
      %v688 = vmul.f32 %v434, %v669
      %v689 = vmul.f32 %v437, %v669
      %v690 = vmul.f32 %v426, %v673
      %v691 = vmul.f32 %v429, %v673
      %v692 = vmul.f32 %v434, %v673
      %v693 = vmul.f32 %v437, %v673
      %v694 = vmul.f32 %v426, %v677
      %v695 = vmul.f32 %v429, %v677
      %v696 = vmul.f32 %v434, %v677
      %v697 = vmul.f32 %v437, %v677
      %v698 = vmul.f32 %v442, %v665
      %v699 = vmul.f32 %v445, %v665
      %v700 = vmul.f32 %v450, %v665
      %v701 = vmul.f32 %v453, %v665
      %v702 = vmul.f32 %v442, %v669
      %v703 = vmul.f32 %v445, %v669
      %v704 = vmul.f32 %v450, %v669
      %v705 = vmul.f32 %v453, %v669
      %v706 = vmul.f32 %v442, %v673
      %v707 = vmul.f32 %v445, %v673
      %v708 = vmul.f32 %v450, %v673
      %v709 = vmul.f32 %v453, %v673
      %v710 = vmul.f32 %v442, %v677
      %v711 = vmul.f32 %v445, %v677
      %v712 = vmul.f32 %v450, %v677
      %v713 = vmul.f32 %v453, %v677
      %v714 = vpack.c.bf16 %v683, %v682
      %v715 = vpack.c.bf16 %v685, %v684
      %v716 = vpack.c.bf16 %v687, %v686
      %v717 = vpack.c.bf16 %v689, %v688
      %v718 = vpack.c.bf16 %v691, %v690
      %v719 = vpack.c.bf16 %v693, %v692
      %v720 = vpack.c.bf16 %v695, %v694
      %v721 = vpack.c.bf16 %v697, %v696
      %v722 = vpack.c.bf16 %v699, %v698
      %v723 = vpack.c.bf16 %v701, %v700
      %v724 = vpack.c.bf16 %v703, %v702
      %v725 = vpack.c.bf16 %v705, %v704
      %v726 = vpack.c.bf16 %v707, %v706
      %v727 = vpack.c.bf16 %v709, %v708
      %v728 = vpack.c.bf16 %v711, %v710
      %v729 = vpack.c.bf16 %v713, %v712
      %v730 = vpack.c.bf16 %v519, %v516
      %v731 = vpack.c.bf16 %v527, %v524
      %v732 = vpack.c.bf16 %v535, %v532
      %v733 = vpack.c.bf16 %v543, %v540
      %v735 = vsel %vm331, %v714, 0
      %v738 = vsel %vm331, %v715, 0
      %v741 = vsel %vm331, %v716, 0
      %v744 = vsel %vm331, %v717, 0
      %v747 = vsel %vm331, %v718, 0
      %v750 = vsel %vm331, %v719, 0
      %v753 = vsel %vm331, %v720, 0
      %v756 = vsel %vm331, %v721, 0
      %v759 = vsel %vm331, %v730, 0
      %v762 = vsel %vm331, %v731, 0
      %764 = vmatprep.subr.bf16.mxu0 0
      %765 = vmatpush1.bf16.xpose.msra.mxu0 %v759
      %766 = vmatprep.subr.bf16.mxu0 0
      %767 = vmatpush1.bf16.xpose.msra.mxu0 %v762
      %768 = vmatprep.subr.bf16.mxu0 0
      %769 = vmatpush1.bf16.xpose.msra.mxu0 0
      %770 = vmatprep.subr.bf16.mxu0 0
      %771 = vmatpush1.bf16.xpose.msra.mxu0 0
      %772 = vmatprep.subr.bf16.mxu0 0
      %773 = vmatpush1.bf16.xpose.msra.mxu0 0
      %774 = vmatprep.subr.bf16.mxu0 0
      %775 = vmatpush1.bf16.xpose.msra.mxu0 0
      %776 = vmatprep.subr.bf16.mxu0 0
      %777 = vmatpush1.bf16.xpose.msra.mxu0 0
      %778 = vmatprep.subr.bf16.mxu0 0
      %779 = vmatpush1.bf16.xpose.msra.mxu0 0
      %780 = vmatprep.subr.bf16.mxu0 0
      %781 = vmatpush1.bf16.xpose.msra.mxu0 0
      %782 = vmatprep.subr.bf16.mxu0 0
      %783 = vmatpush1.bf16.xpose.msra.mxu0 0
      %784 = vmatprep.subr.bf16.mxu0 0
      %785 = vmatpush1.bf16.xpose.msra.mxu0 0
      %786 = vmatprep.subr.bf16.mxu0 0
      %787 = vmatpush1.bf16.xpose.msra.mxu0 0
      %788 = vmatprep.subr.bf16.mxu0 0
      %789 = vmatpush1.bf16.xpose.msra.mxu0 0
      %790 = vmatprep.subr.bf16.mxu0 0
      %791 = vmatpush1.bf16.xpose.msra.mxu0 0
      %792 = vmatprep.subr.bf16.mxu0 0
      %793 = vmatpush1.bf16.xpose.msra.mxu0 0
      %794 = vmatprep.subr.bf16.mxu0 0
      %795 = vmatpush1.bf16.xpose.msra.mxu0 0
      %796 = vmatprep.mubr.bf16.mxu0 0
      %797 = vmatmul.mubr.bf16.gmra.mrb[0].mxu0 %v735
      %v798 = vpop.f32.mrb[0].mxu0
      %v799 = vadd.f32 0.0, %v798
      %v800 = vpop.f32.mrb[0].mxu0
      %v801 = vpop.f32.mrb[0].mxu0
      %v802 = vadd.f32 0.0, %v801
      %v803 = vpop.f32.mrb[0].mxu0
      %804 = vmatprep.mubr.bf16.mxu0 0
      %805 = vmatmul.mubr.bf16.gmra.mrb[0].mxu0 %v738
      %v806 = vpop.f32.mrb[0].mxu0
      %v807 = vadd.f32 0.0, %v806
      %v808 = vpop.f32.mrb[0].mxu0
      %v809 = vpop.f32.mrb[0].mxu0
      %v810 = vadd.f32 0.0, %v809
      %v811 = vpop.f32.mrb[0].mxu0
      %812 = vmatprep.mubr.bf16.mxu0 0
      %813 = vmatmul.mubr.bf16.gmra.mrb[0].mxu0 %v741
      %v814 = vpop.f32.mrb[0].mxu0
      %v815 = vadd.f32 0.0, %v814
      %v816 = vpop.f32.mrb[0].mxu0
      %v817 = vpop.f32.mrb[0].mxu0
      %v818 = vadd.f32 0.0, %v817
      %v819 = vpop.f32.mrb[0].mxu0
      %820 = vmatprep.mubr.bf16.mxu0 0
      %821 = vmatmul.mubr.bf16.gmra.mrb[0].mxu0 %v744
      %v822 = vpop.f32.mrb[0].mxu0
      %v823 = vadd.f32 0.0, %v822
      %v824 = vpop.f32.mrb[0].mxu0
      %v825 = vpop.f32.mrb[0].mxu0
      %v826 = vadd.f32 0.0, %v825
      %v827 = vpop.f32.mrb[0].mxu0
      %828 = vmatprep.mubr.bf16.mxu0 0
      %829 = vmatmul.mubr.bf16.gmra.mrb[0].mxu0 %v747
      %v830 = vpop.f32.mrb[0].mxu0
      %v831 = vadd.f32 0.0, %v830
      %v832 = vpop.f32.mrb[0].mxu0
      %v833 = vpop.f32.mrb[0].mxu0
      %v834 = vadd.f32 0.0, %v833
      %v835 = vpop.f32.mrb[0].mxu0
      %836 = vmatprep.mubr.bf16.mxu0 0
      %837 = vmatmul.mubr.bf16.gmra.mrb[0].mxu0 %v750
      %v838 = vpop.f32.mrb[0].mxu0
      %v839 = vadd.f32 0.0, %v838
      %v840 = vpop.f32.mrb[0].mxu0
      %v841 = vpop.f32.mrb[0].mxu0
      %v842 = vadd.f32 0.0, %v841
      %v843 = vpop.f32.mrb[0].mxu0
      %844 = vmatprep.mubr.bf16.mxu0 0
      %845 = vmatmul.mubr.bf16.gmra.mrb[0].mxu0 %v753
      %v846 = vpop.f32.mrb[0].mxu0
      %v847 = vadd.f32 0.0, %v846
      %v848 = vpop.f32.mrb[0].mxu0
      %v849 = vpop.f32.mrb[0].mxu0
      %v850 = vadd.f32 0.0, %v849
      %v851 = vpop.f32.mrb[0].mxu0
      %852 = vmatprep.mubr.bf16.mxu0 0
      %853 = vmatmul.mubr.bf16.gmra.mrb[0].mxu0 %v756
      %v854 = vpop.f32.mrb[0].mxu0
      %v855 = vadd.f32 0.0, %v854
      %v856 = vpop.f32.mrb[0].mxu0
      %v857 = vpop.f32.mrb[0].mxu0
      %v858 = vadd.f32 0.0, %v857
      %v859 = vpop.f32.mrb[0].mxu0
      %860 = vdwg.mxu0
      %v862 = vsel %vm331, %v722, 0
      %v865 = vsel %vm331, %v723, 0
      %v868 = vsel %vm331, %v724, 0
      %v871 = vsel %vm331, %v725, 0
      %v874 = vsel %vm331, %v726, 0
      %v877 = vsel %vm331, %v727, 0
      %v880 = vsel %vm331, %v728, 0
      %v883 = vsel %vm331, %v729, 0
      %v886 = vsel %vm331, %v732, 0
      %v889 = vsel %vm331, %v733, 0
      %891 = vmatprep.subr.bf16.mxu0 0
      %892 = vmatpush1.bf16.xpose.msra.mxu0 %v886
      %893 = vmatprep.subr.bf16.mxu0 0
      %894 = vmatpush1.bf16.xpose.msra.mxu0 %v889
      %895 = vmatprep.subr.bf16.mxu0 0
      %896 = vmatpush1.bf16.xpose.msra.mxu0 0
      %897 = vmatprep.subr.bf16.mxu0 0
      %898 = vmatpush1.bf16.xpose.msra.mxu0 0
      %899 = vmatprep.subr.bf16.mxu0 0
      %900 = vmatpush1.bf16.xpose.msra.mxu0 0
      %901 = vmatprep.subr.bf16.mxu0 0
      %902 = vmatpush1.bf16.xpose.msra.mxu0 0
      %903 = vmatprep.subr.bf16.mxu0 0
      %904 = vmatpush1.bf16.xpose.msra.mxu0 0
      %905 = vmatprep.subr.bf16.mxu0 0
      %906 = vmatpush1.bf16.xpose.msra.mxu0 0
      %907 = vmatprep.subr.bf16.mxu0 0
      %908 = vmatpush1.bf16.xpose.msra.mxu0 0
      %909 = vmatprep.subr.bf16.mxu0 0
      %910 = vmatpush1.bf16.xpose.msra.mxu0 0
      %911 = vmatprep.subr.bf16.mxu0 0
      %912 = vmatpush1.bf16.xpose.msra.mxu0 0
      %913 = vmatprep.subr.bf16.mxu0 0
      %914 = vmatpush1.bf16.xpose.msra.mxu0 0
      %915 = vmatprep.subr.bf16.mxu0 0
      %916 = vmatpush1.bf16.xpose.msra.mxu0 0
      %917 = vmatprep.subr.bf16.mxu0 0
      %918 = vmatpush1.bf16.xpose.msra.mxu0 0
      %919 = vmatprep.subr.bf16.mxu0 0
      %920 = vmatpush1.bf16.xpose.msra.mxu0 0
      %921 = vmatprep.subr.bf16.mxu0 0
      %922 = vmatpush1.bf16.xpose.msra.mxu0 0
      %923 = vmatprep.mubr.bf16.mxu0 0
      %924 = vmatmul.mubr.bf16.gmra.mrb[0].mxu0 %v862
      %v925 = vpop.f32.mrb[0].mxu0
      %v926 = vadd.f32 0.0, %v925
      %v927 = vpop.f32.mrb[0].mxu0
      %v928 = vpop.f32.mrb[0].mxu0
      %v929 = vadd.f32 0.0, %v928
      %v930 = vpop.f32.mrb[0].mxu0
      %931 = vmatprep.mubr.bf16.mxu0 0
      %932 = vmatmul.mubr.bf16.gmra.mrb[0].mxu0 %v865
      %v933 = vpop.f32.mrb[0].mxu0
      %v934 = vadd.f32 0.0, %v933
      %v935 = vpop.f32.mrb[0].mxu0
      %v936 = vpop.f32.mrb[0].mxu0
      %v937 = vadd.f32 0.0, %v936
      %v938 = vpop.f32.mrb[0].mxu0
      %939 = vmatprep.mubr.bf16.mxu0 0
      %940 = vmatmul.mubr.bf16.gmra.mrb[0].mxu0 %v868
      %v941 = vpop.f32.mrb[0].mxu0
      %v942 = vadd.f32 0.0, %v941
      %v943 = vpop.f32.mrb[0].mxu0
      %v944 = vpop.f32.mrb[0].mxu0
      %v945 = vadd.f32 0.0, %v944
      %v946 = vpop.f32.mrb[0].mxu0
      %947 = vmatprep.mubr.bf16.mxu0 0
      %948 = vmatmul.mubr.bf16.gmra.mrb[0].mxu0 %v871
      %v949 = vpop.f32.mrb[0].mxu0
      %v950 = vadd.f32 0.0, %v949
      %v951 = vpop.f32.mrb[0].mxu0
      %v952 = vpop.f32.mrb[0].mxu0
      %v953 = vadd.f32 0.0, %v952
      %v954 = vpop.f32.mrb[0].mxu0
      %955 = vmatprep.mubr.bf16.mxu0 0
      %956 = vmatmul.mubr.bf16.gmra.mrb[0].mxu0 %v874
      %v957 = vpop.f32.mrb[0].mxu0
      %v958 = vadd.f32 0.0, %v957
      %v959 = vpop.f32.mrb[0].mxu0
      %v960 = vpop.f32.mrb[0].mxu0
      %v961 = vadd.f32 0.0, %v960
      %v962 = vpop.f32.mrb[0].mxu0
      %963 = vmatprep.mubr.bf16.mxu0 0
      %964 = vmatmul.mubr.bf16.gmra.mrb[0].mxu0 %v877
      %v965 = vpop.f32.mrb[0].mxu0
      %v966 = vadd.f32 0.0, %v965
      %v967 = vpop.f32.mrb[0].mxu0
      %v968 = vpop.f32.mrb[0].mxu0
      %v969 = vadd.f32 0.0, %v968
      %v970 = vpop.f32.mrb[0].mxu0
      %971 = vmatprep.mubr.bf16.mxu0 0
      %972 = vmatmul.mubr.bf16.gmra.mrb[0].mxu0 %v880
      %v973 = vpop.f32.mrb[0].mxu0
      %v974 = vadd.f32 0.0, %v973
      %v975 = vpop.f32.mrb[0].mxu0
      %v976 = vpop.f32.mrb[0].mxu0
      %v977 = vadd.f32 0.0, %v976
      %v978 = vpop.f32.mrb[0].mxu0
      %979 = vmatprep.mubr.bf16.mxu0 0
      %980 = vmatmul.mubr.bf16.gmra.mrb[0].mxu0 %v883
      %v981 = vpop.f32.mrb[0].mxu0
      %v982 = vadd.f32 0.0, %v981
      %v983 = vpop.f32.mrb[0].mxu0
      %v984 = vpop.f32.mrb[0].mxu0
      %v985 = vadd.f32 0.0, %v984
      %v986 = vpop.f32.mrb[0].mxu0
      %987 = vdwg.mxu0
      %v988 = vld [vmem:[%s2] sm:$0x1]
      %v989 = vld [vmem:[%s2 + $0x1] sm:$0x1]
      %v992 = vlaneseq
      %v993 = vshrl.u32 %v992, 7
      %v994 = vsub.s32 0, %v993
      %v995 = vrot.slane %v988, %v994
      %v996 = vlaneseq
      %v997 = vshrl.u32 %v996, 7
      %v998 = vsub.s32 0, %v997
      %v999 = vrot.slane %v989, %v998
      %v1002 = vadd.f32 %v799, %v995
      %v1003 = vadd.f32 %v802, %v995
      %v1004 = vadd.f32 %v807, %v995
      %v1005 = vadd.f32 %v810, %v995
      %v1006 = vadd.f32 %v815, %v995
      %v1007 = vadd.f32 %v818, %v995
      %v1008 = vadd.f32 %v823, %v995
      %v1009 = vadd.f32 %v826, %v995
      %v1010 = vadd.f32 %v831, %v995
      %v1011 = vadd.f32 %v834, %v995
      %v1012 = vadd.f32 %v839, %v995
      %v1013 = vadd.f32 %v842, %v995
      %v1014 = vadd.f32 %v847, %v995
      %v1015 = vadd.f32 %v850, %v995
      %v1016 = vadd.f32 %v855, %v995
      %v1017 = vadd.f32 %v858, %v995
      %v1018 = vadd.f32 %v926, %v999
      %v1019 = vadd.f32 %v929, %v999
      %v1020 = vadd.f32 %v934, %v999
      %v1021 = vadd.f32 %v937, %v999
      %v1022 = vadd.f32 %v942, %v999
      %v1023 = vadd.f32 %v945, %v999
      %v1024 = vadd.f32 %v950, %v999
      %v1025 = vadd.f32 %v953, %v999
      %v1026 = vadd.f32 %v958, %v999
      %v1027 = vadd.f32 %v961, %v999
      %v1028 = vadd.f32 %v966, %v999
      %v1029 = vadd.f32 %v969, %v999
      %v1030 = vadd.f32 %v974, %v999
      %v1031 = vadd.f32 %v977, %v999
      %v1032 = vadd.f32 %v982, %v999
      %v1033 = vadd.f32 %v985, %v999
      %v1034 = vsel %vm331, %v1002, -inf
      %1035 = vmax.xlane.f32.xlu0 %v1034
      %v1036 = vpop.xlane.xlu0 %1035
      %v1037 = vsel %vm331, %v1003, -inf
      %1038 = vmax.xlane.f32.xlu0 %v1037
      %v1039 = vpop.xlane.xlu0 %1038
      %v1040 = vsel %vm331, %v1004, -inf
      %1041 = vmax.xlane.f32.xlu0 %v1040
      %v1042 = vpop.xlane.xlu0 %1041
      %v1043 = vsel %vm331, %v1005, -inf
      %1044 = vmax.xlane.f32.xlu0 %v1043
      %v1045 = vpop.xlane.xlu0 %1044
      %v1046 = vsel %vm331, %v1006, -inf
      %1047 = vmax.xlane.f32.xlu0 %v1046
      %v1048 = vpop.xlane.xlu0 %1047
      %v1049 = vsel %vm331, %v1007, -inf
      %1050 = vmax.xlane.f32.xlu0 %v1049
      %v1051 = vpop.xlane.xlu0 %1050
      %v1052 = vsel %vm331, %v1008, -inf
      %1053 = vmax.xlane.f32.xlu0 %v1052
      %v1054 = vpop.xlane.xlu0 %1053
      %v1055 = vsel %vm331, %v1009, -inf
      %1056 = vmax.xlane.f32.xlu0 %v1055
      %v1057 = vpop.xlane.xlu0 %1056
      %v1058 = vsel %vm331, %v1010, -inf
      %1059 = vmax.xlane.f32.xlu0 %v1058
      %v1060 = vpop.xlane.xlu0 %1059
      %v1061 = vsel %vm331, %v1011, -inf
      %1062 = vmax.xlane.f32.xlu0 %v1061
      %v1063 = vpop.xlane.xlu0 %1062
      %v1064 = vsel %vm331, %v1012, -inf
      %1065 = vmax.xlane.f32.xlu0 %v1064
      %v1066 = vpop.xlane.xlu0 %1065
      %v1067 = vsel %vm331, %v1013, -inf
      %1068 = vmax.xlane.f32.xlu0 %v1067
      %v1069 = vpop.xlane.xlu0 %1068
      %v1070 = vsel %vm331, %v1014, -inf
      %1071 = vmax.xlane.f32.xlu0 %v1070
      %v1072 = vpop.xlane.xlu0 %1071
      %v1073 = vsel %vm331, %v1015, -inf
      %1074 = vmax.xlane.f32.xlu0 %v1073
      %v1075 = vpop.xlane.xlu0 %1074
      %v1076 = vsel %vm331, %v1016, -inf
      %1077 = vmax.xlane.f32.xlu0 %v1076
      %v1078 = vpop.xlane.xlu0 %1077
      %v1079 = vsel %vm331, %v1017, -inf
      %1080 = vmax.xlane.f32.xlu0 %v1079
      %v1081 = vpop.xlane.xlu0 %1080
      %v1082 = vsel %vm331, %v1018, -inf
      %1083 = vmax.xlane.f32.xlu0 %v1082
      %v1084 = vpop.xlane.xlu0 %1083
      %v1085 = vsel %vm331, %v1019, -inf
      %1086 = vmax.xlane.f32.xlu0 %v1085
      %v1087 = vpop.xlane.xlu0 %1086
      %v1088 = vsel %vm331, %v1020, -inf
      %1089 = vmax.xlane.f32.xlu0 %v1088
      %v1090 = vpop.xlane.xlu0 %1089
      %v1091 = vsel %vm331, %v1021, -inf
      %1092 = vmax.xlane.f32.xlu0 %v1091
      %v1093 = vpop.xlane.xlu0 %1092
      %v1094 = vsel %vm331, %v1022, -inf
      %1095 = vmax.xlane.f32.xlu0 %v1094
      %v1096 = vpop.xlane.xlu0 %1095
      %v1097 = vsel %vm331, %v1023, -inf
      %1098 = vmax.xlane.f32.xlu0 %v1097
      %v1099 = vpop.xlane.xlu0 %1098
      %v1100 = vsel %vm331, %v1024, -inf
      %1101 = vmax.xlane.f32.xlu0 %v1100
      %v1102 = vpop.xlane.xlu0 %1101
      %v1103 = vsel %vm331, %v1025, -inf
      %1104 = vmax.xlane.f32.xlu0 %v1103
      %v1105 = vpop.xlane.xlu0 %1104
      %v1106 = vsel %vm331, %v1026, -inf
      %1107 = vmax.xlane.f32.xlu0 %v1106
      %v1108 = vpop.xlane.xlu0 %1107
      %v1109 = vsel %vm331, %v1027, -inf
      %1110 = vmax.xlane.f32.xlu0 %v1109
      %v1111 = vpop.xlane.xlu0 %1110
      %v1112 = vsel %vm331, %v1028, -inf
      %1113 = vmax.xlane.f32.xlu0 %v1112
      %v1114 = vpop.xlane.xlu0 %1113
      %v1115 = vsel %vm331, %v1029, -inf
      %1116 = vmax.xlane.f32.xlu0 %v1115
      %v1117 = vpop.xlane.xlu0 %1116
      %v1118 = vsel %vm331, %v1030, -inf
      %1119 = vmax.xlane.f32.xlu0 %v1118
      %v1120 = vpop.xlane.xlu0 %1119
      %v1121 = vsel %vm331, %v1031, -inf
      %1122 = vmax.xlane.f32.xlu0 %v1121
      %v1123 = vpop.xlane.xlu0 %1122
      %v1124 = vsel %vm331, %v1032, -inf
      %1125 = vmax.xlane.f32.xlu0 %v1124
      %v1126 = vpop.xlane.xlu0 %1125
      %v1127 = vsel %vm331, %v1033, -inf
      %1128 = vmax.xlane.f32.xlu0 %v1127
      %v1129 = vpop.xlane.xlu0 %1128
      %v1130 = vsub.f32 %v1002, %v1036
      %v1131 = vsub.f32 %v1003, %v1039
      %v1132 = vsub.f32 %v1004, %v1042
      %v1133 = vsub.f32 %v1005, %v1045
      %v1134 = vsub.f32 %v1006, %v1048
      %v1135 = vsub.f32 %v1007, %v1051
      %v1136 = vsub.f32 %v1008, %v1054
      %v1137 = vsub.f32 %v1009, %v1057
      %v1138 = vsub.f32 %v1010, %v1060
      %v1139 = vsub.f32 %v1011, %v1063
      %v1140 = vsub.f32 %v1012, %v1066
      %v1141 = vsub.f32 %v1013, %v1069
      %v1142 = vsub.f32 %v1014, %v1072
      %v1143 = vsub.f32 %v1015, %v1075
      %v1144 = vsub.f32 %v1016, %v1078
      %v1145 = vsub.f32 %v1017, %v1081
      %v1146 = vsub.f32 %v1018, %v1084
      %v1147 = vsub.f32 %v1019, %v1087
      %v1148 = vsub.f32 %v1020, %v1090
      %v1149 = vsub.f32 %v1021, %v1093
      %v1150 = vsub.f32 %v1022, %v1096
      %v1151 = vsub.f32 %v1023, %v1099
      %v1152 = vsub.f32 %v1024, %v1102
      %v1153 = vsub.f32 %v1025, %v1105
      %v1154 = vsub.f32 %v1026, %v1108
      %v1155 = vsub.f32 %v1027, %v1111
      %v1156 = vsub.f32 %v1028, %v1114
      %v1157 = vsub.f32 %v1029, %v1117
      %v1158 = vsub.f32 %v1030, %v1120
      %v1159 = vsub.f32 %v1031, %v1123
      %v1160 = vsub.f32 %v1032, %v1126
      %v1161 = vsub.f32 %v1033, %v1129
      %v1162 = vmul.f32 %v1130, 1.442695
      %v1163 = vpow.pop %v1162
      %v1164 = vmul.f32 %v1131, 1.442695
      %v1165 = vpow.pop %v1164
      %v1166 = vmul.f32 %v1132, 1.442695
      %v1167 = vpow.pop %v1166
      %v1168 = vmul.f32 %v1133, 1.442695
      %v1169 = vpow.pop %v1168
      %v1170 = vmul.f32 %v1134, 1.442695
      %v1171 = vpow.pop %v1170
      %v1172 = vmul.f32 %v1135, 1.442695
      %v1173 = vpow.pop %v1172
      %v1174 = vmul.f32 %v1136, 1.442695
      %v1175 = vpow.pop %v1174
      %v1176 = vmul.f32 %v1137, 1.442695
      %v1177 = vpow.pop %v1176
      %v1178 = vmul.f32 %v1138, 1.442695
      %v1179 = vpow.pop %v1178
      %v1180 = vmul.f32 %v1139, 1.442695
      %v1181 = vpow.pop %v1180
      %v1182 = vmul.f32 %v1140, 1.442695
      %v1183 = vpow.pop %v1182
      %v1184 = vmul.f32 %v1141, 1.442695
      %v1185 = vpow.pop %v1184
      %v1186 = vmul.f32 %v1142, 1.442695
      %v1187 = vpow.pop %v1186
      %v1188 = vmul.f32 %v1143, 1.442695
      %v1189 = vpow.pop %v1188
      %v1190 = vmul.f32 %v1144, 1.442695
      %v1191 = vpow.pop %v1190
      %v1192 = vmul.f32 %v1145, 1.442695
      %v1193 = vpow.pop %v1192
      %v1194 = vmul.f32 %v1146, 1.442695
      %v1195 = vpow.pop %v1194
      %v1196 = vmul.f32 %v1147, 1.442695
      %v1197 = vpow.pop %v1196
      %v1198 = vmul.f32 %v1148, 1.442695
      %v1199 = vpow.pop %v1198
      %v1200 = vmul.f32 %v1149, 1.442695
      %v1201 = vpow.pop %v1200
      %v1202 = vmul.f32 %v1150, 1.442695
      %v1203 = vpow.pop %v1202
      %v1204 = vmul.f32 %v1151, 1.442695
      %v1205 = vpow.pop %v1204
      %v1206 = vmul.f32 %v1152, 1.442695
      %v1207 = vpow.pop %v1206
      %v1208 = vmul.f32 %v1153, 1.442695
      %v1209 = vpow.pop %v1208
      %v1210 = vmul.f32 %v1154, 1.442695
      %v1211 = vpow.pop %v1210
      %v1212 = vmul.f32 %v1155, 1.442695
      %v1213 = vpow.pop %v1212
      %v1214 = vmul.f32 %v1156, 1.442695
      %v1215 = vpow.pop %v1214
      %v1216 = vmul.f32 %v1157, 1.442695
      %v1217 = vpow.pop %v1216
      %v1218 = vmul.f32 %v1158, 1.442695
      %v1219 = vpow.pop %v1218
      %v1220 = vmul.f32 %v1159, 1.442695
      %v1221 = vpow.pop %v1220
      %v1222 = vmul.f32 %v1160, 1.442695
      %v1223 = vpow.pop %v1222
      %v1224 = vmul.f32 %v1161, 1.442695
      %v1225 = vpow.pop %v1224
      %v1226 = vsel %vm331, %v1163, 0.0
      %1227 = vadd.xlane.f32.xlu0 %v1226
      %v1228 = vpop.xlane.xlu0 %1227
      %v1229 = vsel %vm331, %v1165, 0.0
      %1230 = vadd.xlane.f32.xlu0 %v1229
      %v1231 = vpop.xlane.xlu0 %1230
      %v1232 = vsel %vm331, %v1167, 0.0
      %1233 = vadd.xlane.f32.xlu0 %v1232
      %v1234 = vpop.xlane.xlu0 %1233
      %v1235 = vsel %vm331, %v1169, 0.0
      %1236 = vadd.xlane.f32.xlu0 %v1235
      %v1237 = vpop.xlane.xlu0 %1236
      %v1238 = vsel %vm331, %v1171, 0.0
      %1239 = vadd.xlane.f32.xlu0 %v1238
      %v1240 = vpop.xlane.xlu0 %1239
      %v1241 = vsel %vm331, %v1173, 0.0
      %1242 = vadd.xlane.f32.xlu0 %v1241
      %v1243 = vpop.xlane.xlu0 %1242
      %v1244 = vsel %vm331, %v1175, 0.0
      %1245 = vadd.xlane.f32.xlu0 %v1244
      %v1246 = vpop.xlane.xlu0 %1245
      %v1247 = vsel %vm331, %v1177, 0.0
      %1248 = vadd.xlane.f32.xlu0 %v1247
      %v1249 = vpop.xlane.xlu0 %1248
      %v1250 = vsel %vm331, %v1179, 0.0
      %1251 = vadd.xlane.f32.xlu0 %v1250
      %v1252 = vpop.xlane.xlu0 %1251
      %v1253 = vsel %vm331, %v1181, 0.0
      %1254 = vadd.xlane.f32.xlu0 %v1253
      %v1255 = vpop.xlane.xlu0 %1254
      %v1256 = vsel %vm331, %v1183, 0.0
      %1257 = vadd.xlane.f32.xlu0 %v1256
      %v1258 = vpop.xlane.xlu0 %1257
      %v1259 = vsel %vm331, %v1185, 0.0
      %1260 = vadd.xlane.f32.xlu0 %v1259
      %v1261 = vpop.xlane.xlu0 %1260
      %v1262 = vsel %vm331, %v1187, 0.0
      %1263 = vadd.xlane.f32.xlu0 %v1262
      %v1264 = vpop.xlane.xlu0 %1263
      %v1265 = vsel %vm331, %v1189, 0.0
      %1266 = vadd.xlane.f32.xlu0 %v1265
      %v1267 = vpop.xlane.xlu0 %1266
      %v1268 = vsel %vm331, %v1191, 0.0
      %1269 = vadd.xlane.f32.xlu0 %v1268
      %v1270 = vpop.xlane.xlu0 %1269
      %v1271 = vsel %vm331, %v1193, 0.0
      %1272 = vadd.xlane.f32.xlu0 %v1271
      %v1273 = vpop.xlane.xlu0 %1272
      %v1274 = vsel %vm331, %v1195, 0.0
      %1275 = vadd.xlane.f32.xlu0 %v1274
      %v1276 = vpop.xlane.xlu0 %1275
      %v1277 = vsel %vm331, %v1197, 0.0
      %1278 = vadd.xlane.f32.xlu0 %v1277
      %v1279 = vpop.xlane.xlu0 %1278
      %v1280 = vsel %vm331, %v1199, 0.0
      %1281 = vadd.xlane.f32.xlu0 %v1280
      %v1282 = vpop.xlane.xlu0 %1281
      %v1283 = vsel %vm331, %v1201, 0.0
      %1284 = vadd.xlane.f32.xlu0 %v1283
      %v1285 = vpop.xlane.xlu0 %1284
      %v1286 = vsel %vm331, %v1203, 0.0
      %1287 = vadd.xlane.f32.xlu0 %v1286
      %v1288 = vpop.xlane.xlu0 %1287
      %v1289 = vsel %vm331, %v1205, 0.0
      %1290 = vadd.xlane.f32.xlu0 %v1289
      %v1291 = vpop.xlane.xlu0 %1290
      %v1292 = vsel %vm331, %v1207, 0.0
      %1293 = vadd.xlane.f32.xlu0 %v1292
      %v1294 = vpop.xlane.xlu0 %1293
      %v1295 = vsel %vm331, %v1209, 0.0
      %1296 = vadd.xlane.f32.xlu0 %v1295
      %v1297 = vpop.xlane.xlu0 %1296
      %v1298 = vsel %vm331, %v1211, 0.0
      %1299 = vadd.xlane.f32.xlu0 %v1298
      %v1300 = vpop.xlane.xlu0 %1299
      %v1301 = vsel %vm331, %v1213, 0.0
      %1302 = vadd.xlane.f32.xlu0 %v1301
      %v1303 = vpop.xlane.xlu0 %1302
      %v1304 = vsel %vm331, %v1215, 0.0
      %1305 = vadd.xlane.f32.xlu0 %v1304
      %v1306 = vpop.xlane.xlu0 %1305
      %v1307 = vsel %vm331, %v1217, 0.0
      %1308 = vadd.xlane.f32.xlu0 %v1307
      %v1309 = vpop.xlane.xlu0 %1308
      %v1310 = vsel %vm331, %v1219, 0.0
      %1311 = vadd.xlane.f32.xlu0 %v1310
      %v1312 = vpop.xlane.xlu0 %1311
      %v1313 = vsel %vm331, %v1221, 0.0
      %1314 = vadd.xlane.f32.xlu0 %v1313
      %v1315 = vpop.xlane.xlu0 %1314
      %v1316 = vsel %vm331, %v1223, 0.0
      %1317 = vadd.xlane.f32.xlu0 %v1316
      %v1318 = vpop.xlane.xlu0 %1317
      %v1319 = vsel %vm331, %v1225, 0.0
      %1320 = vadd.xlane.f32.xlu0 %v1319
      %v1321 = vpop.xlane.xlu0 %1320
      %v1322 = vmax.f32 %v1228, 1e-30
      %v1323 = vmax.f32 %v1231, 1e-30
      %v1324 = vmax.f32 %v1234, 1e-30
      %v1325 = vmax.f32 %v1237, 1e-30
      %v1326 = vmax.f32 %v1240, 1e-30
      %v1327 = vmax.f32 %v1243, 1e-30
      %v1328 = vmax.f32 %v1246, 1e-30
      %v1329 = vmax.f32 %v1249, 1e-30
      %v1330 = vmax.f32 %v1252, 1e-30
      %v1331 = vmax.f32 %v1255, 1e-30
      %v1332 = vmax.f32 %v1258, 1e-30
      %v1333 = vmax.f32 %v1261, 1e-30
      %v1334 = vmax.f32 %v1264, 1e-30
      %v1335 = vmax.f32 %v1267, 1e-30
      %v1336 = vmax.f32 %v1270, 1e-30
      %v1337 = vmax.f32 %v1273, 1e-30
      %v1338 = vmax.f32 %v1276, 1e-30
      %v1339 = vmax.f32 %v1279, 1e-30
      %v1340 = vmax.f32 %v1282, 1e-30
      %v1341 = vmax.f32 %v1285, 1e-30
      %v1342 = vmax.f32 %v1288, 1e-30
      %v1343 = vmax.f32 %v1291, 1e-30
      %v1344 = vmax.f32 %v1294, 1e-30
      %v1345 = vmax.f32 %v1297, 1e-30
      %v1346 = vmax.f32 %v1300, 1e-30
      %v1347 = vmax.f32 %v1303, 1e-30
      %v1348 = vmax.f32 %v1306, 1e-30
      %v1349 = vmax.f32 %v1309, 1e-30
      %v1350 = vmax.f32 %v1312, 1e-30
      %v1351 = vmax.f32 %v1315, 1e-30
      %v1352 = vmax.f32 %v1318, 1e-30
      %v1353 = vmax.f32 %v1321, 1e-30
      %v1354 = vrcp.pop %v1322
      %v1355 = vrcp.pop %v1323
      %v1356 = vrcp.pop %v1324
      %v1357 = vrcp.pop %v1325
      %v1358 = vrcp.pop %v1326
      %v1359 = vrcp.pop %v1327
      %v1360 = vrcp.pop %v1328
      %v1361 = vrcp.pop %v1329
      %v1362 = vrcp.pop %v1330
      %v1363 = vrcp.pop %v1331
      %v1364 = vrcp.pop %v1332
      %v1365 = vrcp.pop %v1333
      %v1366 = vrcp.pop %v1334
      %v1367 = vrcp.pop %v1335
      %v1368 = vrcp.pop %v1336
      %v1369 = vrcp.pop %v1337
      %v1370 = vrcp.pop %v1338
      %v1371 = vrcp.pop %v1339
      %v1372 = vrcp.pop %v1340
      %v1373 = vrcp.pop %v1341
      %v1374 = vrcp.pop %v1342
      %v1375 = vrcp.pop %v1343
      %v1376 = vrcp.pop %v1344
      %v1377 = vrcp.pop %v1345
      %v1378 = vrcp.pop %v1346
      %v1379 = vrcp.pop %v1347
      %v1380 = vrcp.pop %v1348
      %v1381 = vrcp.pop %v1349
      %v1382 = vrcp.pop %v1350
      %v1383 = vrcp.pop %v1351
      %v1384 = vrcp.pop %v1352
      %v1385 = vrcp.pop %v1353
      %v1386 = vmul.f32 %v1163, %v1354
      %v1387 = vmul.f32 %v1165, %v1355
      %v1388 = vmul.f32 %v1167, %v1356
      %v1389 = vmul.f32 %v1169, %v1357
      %v1390 = vmul.f32 %v1171, %v1358
      %v1391 = vmul.f32 %v1173, %v1359
      %v1392 = vmul.f32 %v1175, %v1360
      %v1393 = vmul.f32 %v1177, %v1361
      %v1394 = vmul.f32 %v1179, %v1362
      %v1395 = vmul.f32 %v1181, %v1363
      %v1396 = vmul.f32 %v1183, %v1364
      %v1397 = vmul.f32 %v1185, %v1365
      %v1398 = vmul.f32 %v1187, %v1366
      %v1399 = vmul.f32 %v1189, %v1367
      %v1400 = vmul.f32 %v1191, %v1368
      %v1401 = vmul.f32 %v1193, %v1369
      %v1402 = vmul.f32 %v1195, %v1370
      %v1403 = vmul.f32 %v1197, %v1371
      %v1404 = vmul.f32 %v1199, %v1372
      %v1405 = vmul.f32 %v1201, %v1373
      %v1406 = vmul.f32 %v1203, %v1374
      %v1407 = vmul.f32 %v1205, %v1375
      %v1408 = vmul.f32 %v1207, %v1376
      %v1409 = vmul.f32 %v1209, %v1377
      %v1410 = vmul.f32 %v1211, %v1378
      %v1411 = vmul.f32 %v1213, %v1379
      %v1412 = vmul.f32 %v1215, %v1380
      %v1413 = vmul.f32 %v1217, %v1381
      %v1414 = vmul.f32 %v1219, %v1382
      %v1415 = vmul.f32 %v1221, %v1383
      %v1416 = vmul.f32 %v1223, %v1384
      %v1417 = vmul.f32 %v1225, %v1385
      %v1418 = vpack.c.bf16 %v1387, %v1386
      %v1419 = vpack.c.bf16 %v1389, %v1388
      %v1420 = vpack.c.bf16 %v1391, %v1390
      %v1421 = vpack.c.bf16 %v1393, %v1392
      %v1422 = vpack.c.bf16 %v1395, %v1394
      %v1423 = vpack.c.bf16 %v1397, %v1396
      %v1424 = vpack.c.bf16 %v1399, %v1398
      %v1425 = vpack.c.bf16 %v1401, %v1400
      %v1426 = vpack.c.bf16 %v1403, %v1402
      %v1427 = vpack.c.bf16 %v1405, %v1404
      %v1428 = vpack.c.bf16 %v1407, %v1406
      %v1429 = vpack.c.bf16 %v1409, %v1408
      %v1430 = vpack.c.bf16 %v1411, %v1410
      %v1431 = vpack.c.bf16 %v1413, %v1412
      %v1432 = vpack.c.bf16 %v1415, %v1414
      %v1433 = vpack.c.bf16 %v1417, %v1416
      %v1434 = vpack.c.bf16 %v609, %v606
      %v1435 = vpack.c.bf16 %v617, %v614
      %v1436 = vpack.c.bf16 %v625, %v622
      %v1437 = vpack.c.bf16 %v633, %v630
      %v1439 = vsel %vm331, %v1418, 0
      %v1442 = vsel %vm331, %v1419, 0
      %v1445 = vsel %vm331, %v1420, 0
      %v1448 = vsel %vm331, %v1421, 0
      %v1451 = vsel %vm331, %v1422, 0
      %v1454 = vsel %vm331, %v1423, 0
      %v1457 = vsel %vm331, %v1424, 0
      %v1460 = vsel %vm331, %v1425, 0
      %1462 = vmatprep.subr.bf16.mxu0 0
      %1463 = vmatpush1.bf16.msra.mxu0 %v1434
      %1464 = vmatprep.subr.bf16.mxu0 0
      %1465 = vmatpush1.bf16.msra.mxu0 %v1435
      %1466 = vmatprep.subr.bf16.mxu0 0
      %1467 = vmatpush1.bf16.msra.mxu0 0
      %1468 = vmatprep.subr.bf16.mxu0 0
      %1469 = vmatpush1.bf16.msra.mxu0 0
      %1470 = vmatprep.subr.bf16.mxu0 0
      %1471 = vmatpush1.bf16.msra.mxu0 0
      %1472 = vmatprep.subr.bf16.mxu0 0
      %1473 = vmatpush1.bf16.msra.mxu0 0
      %1474 = vmatprep.subr.bf16.mxu0 0
      %1475 = vmatpush1.bf16.msra.mxu0 0
      %1476 = vmatprep.subr.bf16.mxu0 0
      %1477 = vmatpush1.bf16.msra.mxu0 0
      %1478 = vmatprep.subr.bf16.mxu0 0
      %1479 = vmatpush1.bf16.msra.mxu0 0
      %1480 = vmatprep.subr.bf16.mxu0 0
      %1481 = vmatpush1.bf16.msra.mxu0 0
      %1482 = vmatprep.subr.bf16.mxu0 0
      %1483 = vmatpush1.bf16.msra.mxu0 0
      %1484 = vmatprep.subr.bf16.mxu0 0
      %1485 = vmatpush1.bf16.msra.mxu0 0
      %1486 = vmatprep.subr.bf16.mxu0 0
      %1487 = vmatpush1.bf16.msra.mxu0 0
      %1488 = vmatprep.subr.bf16.mxu0 0
      %1489 = vmatpush1.bf16.msra.mxu0 0
      %1490 = vmatprep.subr.bf16.mxu0 0
      %1491 = vmatpush1.bf16.msra.mxu0 0
      %1492 = vmatprep.subr.bf16.mxu0 0
      %1493 = vmatpush1.bf16.msra.mxu0 0
      %1494 = vmatprep.mubr.bf16.mxu0 0
      %1495 = vmatmul.mubr.bf16.gmra.mrb[0].mxu0 %v1439
      %v1496 = vpop.f32.mrb[0].mxu0
      %v1497 = vadd.f32 0.0, %v1496
      %v1498 = vpop.f32.mrb[0].mxu0
      %v1499 = vpop.f32.mrb[0].mxu0
      %v1500 = vadd.f32 0.0, %v1499
      %v1501 = vpop.f32.mrb[0].mxu0
      %1502 = vmatprep.mubr.bf16.mxu0 0
      %1503 = vmatmul.mubr.bf16.gmra.mrb[0].mxu0 %v1442
      %v1504 = vpop.f32.mrb[0].mxu0
      %v1505 = vadd.f32 0.0, %v1504
      %v1506 = vpop.f32.mrb[0].mxu0
      %v1507 = vpop.f32.mrb[0].mxu0
      %v1508 = vadd.f32 0.0, %v1507
      %v1509 = vpop.f32.mrb[0].mxu0
      %1510 = vmatprep.mubr.bf16.mxu0 0
      %1511 = vmatmul.mubr.bf16.gmra.mrb[0].mxu0 %v1445
      %v1512 = vpop.f32.mrb[0].mxu0
      %v1513 = vadd.f32 0.0, %v1512
      %v1514 = vpop.f32.mrb[0].mxu0
      %v1515 = vpop.f32.mrb[0].mxu0
      %v1516 = vadd.f32 0.0, %v1515
      %v1517 = vpop.f32.mrb[0].mxu0
      %1518 = vmatprep.mubr.bf16.mxu0 0
      %1519 = vmatmul.mubr.bf16.gmra.mrb[0].mxu0 %v1448
      %v1520 = vpop.f32.mrb[0].mxu0
      %v1521 = vadd.f32 0.0, %v1520
      %v1522 = vpop.f32.mrb[0].mxu0
      %v1523 = vpop.f32.mrb[0].mxu0
      %v1524 = vadd.f32 0.0, %v1523
      %v1525 = vpop.f32.mrb[0].mxu0
      %1526 = vmatprep.mubr.bf16.mxu0 0
      %1527 = vmatmul.mubr.bf16.gmra.mrb[0].mxu0 %v1451
      %v1528 = vpop.f32.mrb[0].mxu0
      %v1529 = vadd.f32 0.0, %v1528
      %v1530 = vpop.f32.mrb[0].mxu0
      %v1531 = vpop.f32.mrb[0].mxu0
      %v1532 = vadd.f32 0.0, %v1531
      %v1533 = vpop.f32.mrb[0].mxu0
      %1534 = vmatprep.mubr.bf16.mxu0 0
      %1535 = vmatmul.mubr.bf16.gmra.mrb[0].mxu0 %v1454
      %v1536 = vpop.f32.mrb[0].mxu0
      %v1537 = vadd.f32 0.0, %v1536
      %v1538 = vpop.f32.mrb[0].mxu0
      %v1539 = vpop.f32.mrb[0].mxu0
      %v1540 = vadd.f32 0.0, %v1539
      %v1541 = vpop.f32.mrb[0].mxu0
      %1542 = vmatprep.mubr.bf16.mxu0 0
      %1543 = vmatmul.mubr.bf16.gmra.mrb[0].mxu0 %v1457
      %v1544 = vpop.f32.mrb[0].mxu0
      %v1545 = vadd.f32 0.0, %v1544
      %v1546 = vpop.f32.mrb[0].mxu0
      %v1547 = vpop.f32.mrb[0].mxu0
      %v1548 = vadd.f32 0.0, %v1547
      %v1549 = vpop.f32.mrb[0].mxu0
      %1550 = vmatprep.mubr.bf16.mxu0 0
      %1551 = vmatmul.mubr.bf16.gmra.mrb[0].mxu0 %v1460
      %v1552 = vpop.f32.mrb[0].mxu0
      %v1553 = vadd.f32 0.0, %v1552
      %v1554 = vpop.f32.mrb[0].mxu0
      %v1555 = vpop.f32.mrb[0].mxu0
      %v1556 = vadd.f32 0.0, %v1555
      %v1557 = vpop.f32.mrb[0].mxu0
      %1558 = vdwg.mxu0
      %v1560 = vsel %vm331, %v1426, 0
      %v1563 = vsel %vm331, %v1427, 0
      %v1566 = vsel %vm331, %v1428, 0
      %v1569 = vsel %vm331, %v1429, 0
      %v1572 = vsel %vm331, %v1430, 0
      %v1575 = vsel %vm331, %v1431, 0
      %v1578 = vsel %vm331, %v1432, 0
      %v1581 = vsel %vm331, %v1433, 0
      %1583 = vmatprep.subr.bf16.mxu0 0
      %1584 = vmatpush1.bf16.msra.mxu0 %v1436
      %1585 = vmatprep.subr.bf16.mxu0 0
      %1586 = vmatpush1.bf16.msra.mxu0 %v1437
      %1587 = vmatprep.subr.bf16.mxu0 0
      %1588 = vmatpush1.bf16.msra.mxu0 0
      %1589 = vmatprep.subr.bf16.mxu0 0
      %1590 = vmatpush1.bf16.msra.mxu0 0
      %1591 = vmatprep.subr.bf16.mxu0 0
      %1592 = vmatpush1.bf16.msra.mxu0 0
      %1593 = vmatprep.subr.bf16.mxu0 0
      %1594 = vmatpush1.bf16.msra.mxu0 0
      %1595 = vmatprep.subr.bf16.mxu0 0
      %1596 = vmatpush1.bf16.msra.mxu0 0
      %1597 = vmatprep.subr.bf16.mxu0 0
      %1598 = vmatpush1.bf16.msra.mxu0 0
      %1599 = vmatprep.subr.bf16.mxu0 0
      %1600 = vmatpush1.bf16.msra.mxu0 0
      %1601 = vmatprep.subr.bf16.mxu0 0
      %1602 = vmatpush1.bf16.msra.mxu0 0
      %1603 = vmatprep.subr.bf16.mxu0 0
      %1604 = vmatpush1.bf16.msra.mxu0 0
      %1605 = vmatprep.subr.bf16.mxu0 0
      %1606 = vmatpush1.bf16.msra.mxu0 0
      %1607 = vmatprep.subr.bf16.mxu0 0
      %1608 = vmatpush1.bf16.msra.mxu0 0
      %1609 = vmatprep.subr.bf16.mxu0 0
      %1610 = vmatpush1.bf16.msra.mxu0 0
      %1611 = vmatprep.subr.bf16.mxu0 0
      %1612 = vmatpush1.bf16.msra.mxu0 0
      %1613 = vmatprep.subr.bf16.mxu0 0
      %1614 = vmatpush1.bf16.msra.mxu0 0
      %1615 = vmatprep.mubr.bf16.mxu0 0
      %1616 = vmatmul.mubr.bf16.gmra.mrb[0].mxu0 %v1560
      %v1617 = vpop.f32.mrb[0].mxu0
      %v1618 = vadd.f32 0.0, %v1617
      %v1619 = vpop.f32.mrb[0].mxu0
      %v1620 = vpop.f32.mrb[0].mxu0
      %v1621 = vadd.f32 0.0, %v1620
      %v1622 = vpop.f32.mrb[0].mxu0
      %1623 = vmatprep.mubr.bf16.mxu0 0
      %1624 = vmatmul.mubr.bf16.gmra.mrb[0].mxu0 %v1563
      %v1625 = vpop.f32.mrb[0].mxu0
      %v1626 = vadd.f32 0.0, %v1625
      %v1627 = vpop.f32.mrb[0].mxu0
      %v1628 = vpop.f32.mrb[0].mxu0
      %v1629 = vadd.f32 0.0, %v1628
      %v1630 = vpop.f32.mrb[0].mxu0
      %1631 = vmatprep.mubr.bf16.mxu0 0
      %1632 = vmatmul.mubr.bf16.gmra.mrb[0].mxu0 %v1566
      %v1633 = vpop.f32.mrb[0].mxu0
      %v1634 = vadd.f32 0.0, %v1633
      %v1635 = vpop.f32.mrb[0].mxu0
      %v1636 = vpop.f32.mrb[0].mxu0
      %v1637 = vadd.f32 0.0, %v1636
      %v1638 = vpop.f32.mrb[0].mxu0
      %1639 = vmatprep.mubr.bf16.mxu0 0
      %1640 = vmatmul.mubr.bf16.gmra.mrb[0].mxu0 %v1569
      %v1641 = vpop.f32.mrb[0].mxu0
      %v1642 = vadd.f32 0.0, %v1641
      %v1643 = vpop.f32.mrb[0].mxu0
      %v1644 = vpop.f32.mrb[0].mxu0
      %v1645 = vadd.f32 0.0, %v1644
      %v1646 = vpop.f32.mrb[0].mxu0
      %1647 = vmatprep.mubr.bf16.mxu0 0
      %1648 = vmatmul.mubr.bf16.gmra.mrb[0].mxu0 %v1572
      %v1649 = vpop.f32.mrb[0].mxu0
      %v1650 = vadd.f32 0.0, %v1649
      %v1651 = vpop.f32.mrb[0].mxu0
      %v1652 = vpop.f32.mrb[0].mxu0
      %v1653 = vadd.f32 0.0, %v1652
      %v1654 = vpop.f32.mrb[0].mxu0
      %1655 = vmatprep.mubr.bf16.mxu0 0
      %1656 = vmatmul.mubr.bf16.gmra.mrb[0].mxu0 %v1575
      %v1657 = vpop.f32.mrb[0].mxu0
      %v1658 = vadd.f32 0.0, %v1657
      %v1659 = vpop.f32.mrb[0].mxu0
      %v1660 = vpop.f32.mrb[0].mxu0
      %v1661 = vadd.f32 0.0, %v1660
      %v1662 = vpop.f32.mrb[0].mxu0
      %1663 = vmatprep.mubr.bf16.mxu0 0
      %1664 = vmatmul.mubr.bf16.gmra.mrb[0].mxu0 %v1578
      %v1665 = vpop.f32.mrb[0].mxu0
      %v1666 = vadd.f32 0.0, %v1665
      %v1667 = vpop.f32.mrb[0].mxu0
      %v1668 = vpop.f32.mrb[0].mxu0
      %v1669 = vadd.f32 0.0, %v1668
      %v1670 = vpop.f32.mrb[0].mxu0
      %1671 = vmatprep.mubr.bf16.mxu0 0
      %1672 = vmatmul.mubr.bf16.gmra.mrb[0].mxu0 %v1581
      %v1673 = vpop.f32.mrb[0].mxu0
      %v1674 = vadd.f32 0.0, %v1673
      %v1675 = vpop.f32.mrb[0].mxu0
      %v1676 = vpop.f32.mrb[0].mxu0
      %v1677 = vadd.f32 0.0, %v1676
      %v1678 = vpop.f32.mrb[0].mxu0
      %1679 = vdwg.mxu0
      %v1680 = vmul.f32 %v1497, %v665
      %v1681 = vmul.f32 %v1500, %v665
      %v1682 = vmul.f32 %v1505, %v665
      %v1683 = vmul.f32 %v1508, %v665
      %v1684 = vmul.f32 %v1513, %v669
      %v1685 = vmul.f32 %v1516, %v669
      %v1686 = vmul.f32 %v1521, %v669
      %v1687 = vmul.f32 %v1524, %v669
      %v1688 = vmul.f32 %v1529, %v673
      %v1689 = vmul.f32 %v1532, %v673
      %v1690 = vmul.f32 %v1537, %v673
      %v1691 = vmul.f32 %v1540, %v673
      %v1692 = vmul.f32 %v1545, %v677
      %v1693 = vmul.f32 %v1548, %v677
      %v1694 = vmul.f32 %v1553, %v677
      %v1695 = vmul.f32 %v1556, %v677
      %v1696 = vmul.f32 %v1618, %v665
      %v1697 = vmul.f32 %v1621, %v665
      %v1698 = vmul.f32 %v1626, %v665
      %v1699 = vmul.f32 %v1629, %v665
      %v1700 = vmul.f32 %v1634, %v669
      %v1701 = vmul.f32 %v1637, %v669
      %v1702 = vmul.f32 %v1642, %v669
      %v1703 = vmul.f32 %v1645, %v669
      %v1704 = vmul.f32 %v1650, %v673
      %v1705 = vmul.f32 %v1653, %v673
      %v1706 = vmul.f32 %v1658, %v673
      %v1707 = vmul.f32 %v1661, %v673
      %v1708 = vmul.f32 %v1666, %v677
      %v1709 = vmul.f32 %v1669, %v677
      %v1710 = vmul.f32 %v1674, %v677
      %v1711 = vmul.f32 %v1677, %v677
      %v1712 = vsel %vm331, %v1680, 0.0
      %v1713 = vsel %vm331, %v1684, 0.0
      %v1714 = vadd.f32 %v1712, %v1713
      %v1715 = vsel %vm331, %v1688, 0.0
      %v1716 = vadd.f32 %v1714, %v1715
      %v1717 = vsel %vm331, %v1692, 0.0
      %v1718 = vadd.f32 %v1716, %v1717
      %v1719 = vsel %vm331, %v1681, 0.0
      %v1720 = vsel %vm331, %v1685, 0.0
      %v1721 = vadd.f32 %v1719, %v1720
      %v1722 = vsel %vm331, %v1689, 0.0
      %v1723 = vadd.f32 %v1721, %v1722
      %v1724 = vsel %vm331, %v1693, 0.0
      %v1725 = vadd.f32 %v1723, %v1724
      %v1726 = vsel %vm331, %v1682, 0.0
      %v1727 = vsel %vm331, %v1686, 0.0
      %v1728 = vadd.f32 %v1726, %v1727
      %v1729 = vsel %vm331, %v1690, 0.0
      %v1730 = vadd.f32 %v1728, %v1729
      %v1731 = vsel %vm331, %v1694, 0.0
      %v1732 = vadd.f32 %v1730, %v1731
      %v1733 = vsel %vm331, %v1683, 0.0
      %v1734 = vsel %vm331, %v1687, 0.0
      %v1735 = vadd.f32 %v1733, %v1734
      %v1736 = vsel %vm331, %v1691, 0.0
      %v1737 = vadd.f32 %v1735, %v1736
      %v1738 = vsel %vm331, %v1695, 0.0
      %v1739 = vadd.f32 %v1737, %v1738
      %v1740 = vsel %vm331, %v1696, 0.0
      %v1741 = vsel %vm331, %v1700, 0.0
      %v1742 = vadd.f32 %v1740, %v1741
      %v1743 = vsel %vm331, %v1704, 0.0
      %v1744 = vadd.f32 %v1742, %v1743
      %v1745 = vsel %vm331, %v1708, 0.0
      %v1746 = vadd.f32 %v1744, %v1745
      %v1747 = vsel %vm331, %v1697, 0.0
      %v1748 = vsel %vm331, %v1701, 0.0
      %v1749 = vadd.f32 %v1747, %v1748
      %v1750 = vsel %vm331, %v1705, 0.0
      %v1751 = vadd.f32 %v1749, %v1750
      %v1752 = vsel %vm331, %v1709, 0.0
      %v1753 = vadd.f32 %v1751, %v1752
      %v1754 = vsel %vm331, %v1698, 0.0
      %v1755 = vsel %vm331, %v1702, 0.0
      %v1756 = vadd.f32 %v1754, %v1755
      %v1757 = vsel %vm331, %v1706, 0.0
      %v1758 = vadd.f32 %v1756, %v1757
      %v1759 = vsel %vm331, %v1710, 0.0
      %v1760 = vadd.f32 %v1758, %v1759
      %v1761 = vsel %vm331, %v1699, 0.0
      %v1762 = vsel %vm331, %v1703, 0.0
      %v1763 = vadd.f32 %v1761, %v1762
      %v1764 = vsel %vm331, %v1707, 0.0
      %v1765 = vadd.f32 %v1763, %v1764
      %v1766 = vsel %vm331, %v1711, 0.0
      %v1767 = vadd.f32 %v1765, %v1766
      %v1768 = vpack.c.bf16 %v1725, %v1718
      %v1769 = vpack.c.bf16 %v1739, %v1732
      %v1770 = vpack.c.bf16 %v1753, %v1746
      %v1771 = vpack.c.bf16 %v1767, %v1760
      %v1772 = vld [vmem:[%s6] sm:$0xf]
      %v1773 = vld [vmem:[%s6 + $0x4] sm:$0xf]
      %v1774 = vld [vmem:[%s6 + $0x8] sm:$0xf]
      %v1775 = vld [vmem:[%s6 + $0xc] sm:$0xf]
      %v1776 = vld [vmem:[%s7] sm:$0x1]
      %v1778 = vlaneseq
      %v1779 = vshrl.u32 %v1778, 7
      %v1780 = vsub.s32 0, %v1779
      %v1781 = vrot.slane %v1776, %v1780
      %v1787 = vunpack.c.l.b16 %v1772
      %v1788 = vunpack.c.l.b16 %v1773
      %v1789 = vunpack.c.l.b16 %v1774
      %v1790 = vunpack.c.l.b16 %v1775
      %v1791 = vpack.c.b16 %v1788, %v1787
      %v1792 = vpack.c.b16 %v1790, %v1789
      %v1796 = vsel %vm331, %v1768, 0
      %v1799 = vsel %vm331, %v1769, 0
      %v1802 = vsel %vm331, %v1770, 0
      %v1805 = vsel %vm331, %v1771, 0
      %1807 = vmatprep.subr.bf16.mxu0 0
      %1808 = vmatpush1.bf16.msra.mxu0 %v1791
      %1809 = vmatprep.subr.bf16.mxu0 0
      %1810 = vmatpush1.bf16.msra.mxu0 %v1792
      %1811 = vmatprep.subr.bf16.mxu0 0
      %1812 = vmatpush1.bf16.msra.mxu0 0
      %1813 = vmatprep.subr.bf16.mxu0 0
      %1814 = vmatpush1.bf16.msra.mxu0 0
      %1815 = vmatprep.subr.bf16.mxu0 0
      %1816 = vmatpush1.bf16.msra.mxu0 0
      %1817 = vmatprep.subr.bf16.mxu0 0
      %1818 = vmatpush1.bf16.msra.mxu0 0
      %1819 = vmatprep.subr.bf16.mxu0 0
      %1820 = vmatpush1.bf16.msra.mxu0 0
      %1821 = vmatprep.subr.bf16.mxu0 0
      %1822 = vmatpush1.bf16.msra.mxu0 0
      %1823 = vmatprep.subr.bf16.mxu0 0
      %1824 = vmatpush1.bf16.msra.mxu0 0
      %1825 = vmatprep.subr.bf16.mxu0 0
      %1826 = vmatpush1.bf16.msra.mxu0 0
      %1827 = vmatprep.subr.bf16.mxu0 0
      %1828 = vmatpush1.bf16.msra.mxu0 0
      %1829 = vmatprep.subr.bf16.mxu0 0
      %1830 = vmatpush1.bf16.msra.mxu0 0
      %1831 = vmatprep.subr.bf16.mxu0 0
      %1832 = vmatpush1.bf16.msra.mxu0 0
      %1833 = vmatprep.subr.bf16.mxu0 0
      %1834 = vmatpush1.bf16.msra.mxu0 0
      %1835 = vmatprep.subr.bf16.mxu0 0
      %1836 = vmatpush1.bf16.msra.mxu0 0
      %1837 = vmatprep.subr.bf16.mxu0 0
      %1838 = vmatpush1.bf16.msra.mxu0 0
      %1839 = vmatprep.mubr.bf16.mxu0 0
      %1840 = vmatmul.mubr.bf16.gmra.mrb[0].mxu0 %v1796
      %v1841 = vpop.f32.mrb[0].mxu0
      %v1842 = vadd.f32 %v1781, %v1841
      %v1843 = vpop.f32.mrb[0].mxu0
      %v1844 = vpop.f32.mrb[0].mxu0
      %v1845 = vadd.f32 %v1781, %v1844
      %v1846 = vpop.f32.mrb[0].mxu0
      %1847 = vmatprep.mubr.bf16.mxu0 0
      %1848 = vmatmul.mubr.bf16.gmra.mrb[0].mxu0 %v1799
      %v1849 = vpop.f32.mrb[0].mxu0
      %v1850 = vadd.f32 %v1781, %v1849
      %v1851 = vpop.f32.mrb[0].mxu0
      %v1852 = vpop.f32.mrb[0].mxu0
      %v1853 = vadd.f32 %v1781, %v1852
      %v1854 = vpop.f32.mrb[0].mxu0
      %1855 = vmatprep.mubr.bf16.mxu0 0
      %1856 = vmatmul.mubr.bf16.gmra.mrb[0].mxu0 %v1802
      %v1857 = vpop.f32.mrb[0].mxu0
      %v1858 = vadd.f32 %v1781, %v1857
      %v1859 = vpop.f32.mrb[0].mxu0
      %v1860 = vpop.f32.mrb[0].mxu0
      %v1861 = vadd.f32 %v1781, %v1860
      %v1862 = vpop.f32.mrb[0].mxu0
      %1863 = vmatprep.mubr.bf16.mxu0 0
      %1864 = vmatmul.mubr.bf16.gmra.mrb[0].mxu0 %v1805
      %v1865 = vpop.f32.mrb[0].mxu0
      %v1866 = vadd.f32 %v1781, %v1865
      %v1867 = vpop.f32.mrb[0].mxu0
      %v1868 = vpop.f32.mrb[0].mxu0
      %v1869 = vadd.f32 %v1781, %v1868
      %v1870 = vpop.f32.mrb[0].mxu0
      %1871 = vdwg.mxu0
      %v1872 = vpack.c.bf16 %v1845, %v1842
      %v1873 = vpack.c.bf16 %v1853, %v1850
      %v1874 = vpack.c.bf16 %v1861, %v1858
      %v1875 = vpack.c.bf16 %v1869, %v1866
      %v1880 = vunpack.c.l.b16 %v1872
      %v1881 = vunpack.c.h.b16 %v1872
      %v1882 = vunpack.c.l.b16 %v1873
      %v1883 = vunpack.c.h.b16 %v1873
      %v1884 = vunpack.c.l.b16 %v1874
      %v1885 = vunpack.c.h.b16 %v1874
      %v1886 = vunpack.c.l.b16 %v1875
      %v1887 = vunpack.c.h.b16 %v1875
      %v1888 = vpack.c.b16 %v1880, %v1880
      %v1889 = vpack.c.b16 %v1881, %v1881
      %v1890 = vpack.c.b16 %v1882, %v1882
      %v1891 = vpack.c.b16 %v1883, %v1883
      %v1892 = vpack.c.b16 %v1884, %v1884
      %v1893 = vpack.c.b16 %v1885, %v1885
      %v1894 = vpack.c.b16 %v1886, %v1886
      %v1895 = vpack.c.b16 %v1887, %v1887
      %vm1904 = vcmask 257024
      %1905 = vst.msk [vmem:[%s312] sm:$0xf] %vm1904, %v1888
      %1906 = vst.msk [vmem:[%s312 + $0x4] sm:$0xf] %vm1904, %v1889
      %1907 = vst.msk [vmem:[%s312 + $0x8] sm:$0xf] %vm1904, %v1890
      %1908 = vst.msk [vmem:[%s312 + $0xc] sm:$0xf] %vm1904, %v1891
      %1909 = vst.msk [vmem:[%s312 + $0x10] sm:$0xf] %vm1904, %v1892
      %1910 = vst.msk [vmem:[%s312 + $0x14] sm:$0xf] %vm1904, %v1893
      %1911 = vst.msk [vmem:[%s312 + $0x18] sm:$0xf] %vm1904, %v1894
      %1912 = vst.msk [vmem:[%s312 + $0x1c] sm:$0xf] %vm1904, %v1895
      %s1913 = smul.u32 2, %s19
      %p1914 = scmp.lt.s32.totalorder %s1913, 7
      %s1915 = scalar_select %p1914, %s1913, 7
      %s1916 = smul.addr %s1915, 4
      %s1917 = smul.addr %s1916, 4
      %s1918 = scalar_lea.vmem %s8, %s1917
      // Predicated region
      $region53: #{windowed_attention_forward.1} parent=51 // pred_check
        %p1919 = pneg %p210
      $region54: #{windowed_attention_forward.1} parent=51 // pred_check_branch
        %1921 = sbr.rel (%p1919) target = $region56
      $region55: #{windowed_attention_forward.1} parent=51 // pred_region
        %s1922 = smul.u32 2, %s19
      $region56: #{windowed_attention_forward.1} parent=51 // pred_fallthru
        _
    $region52: #{windowed_attention_forward.1} parent=5 // pred_fallthru
      _
    %p1923 = scmp.le.s32.totalorder 2, %s14
    // Predicated region
    $region57: #{windowed_attention_forward.1} parent=5 // pred_check
      %p1924 = pneg %p1923
    $region58: #{windowed_attention_forward.1} parent=5 // pred_check_branch
      %1926 = sbr.rel (%p1924) target = $region60
    $region59: #{windowed_attention_forward.1} parent=5 // pred_region
      %s1927 = ssub.s32 %s14, 2
      // Predicated region
      $region61: #{windowed_attention_forward.1} parent=59 // pred_check
        %p1928 = pneg %p216
      $region62: #{windowed_attention_forward.1} parent=59 // pred_check_branch
        %1930 = sbr.rel (%p1928) target = $region64
      $region63: #{windowed_attention_forward.1} parent=59 // pred_region
        %s1931 = smul.u32 2, %s20
        %p1932 = scmp.lt.s32.totalorder %s1931, 7
        %s1933 = scalar_select %p1932, %s1931, 7
        %s1934 = smul.addr %s1933, 4
        %s1935 = smul.addr %s1934, 4
        %s1936 = scalar_lea.vmem %s8, %s1935
      $region64: #{windowed_attention_forward.1} parent=59 // pred_fallthru
        _
    $region60: #{windowed_attention_forward.1} parent=5 // pred_fallthru
      _
  $region6: #{windowed_attention_forward.1} parent=0 // loop_footer
    %s18 = sadd.s32 1, %s14
  $region7: #{windowed_attention_forward.1} parent=0 // loop_footer_branch
    %13 = sbr.rel target = $region3
  $region8: #{windowed_attention_forward.1} parent=0 // loop_exit
    _

</llo_original>
